<compile_context>
chip_gen: v7x
topology: tpu7x:2x2x1
jax: 0.10.0
libtpu: 0.0.40
codegen_flags: <defaults>
</compile_context>

<pallas_src>
import functools

import jax
import jax.numpy as jnp
from jax import lax
from jax.experimental import pallas as pl
from jax.experimental.pallas import tpu as pltpu

# ----------------------------- config ---------------------------------------
BATCH = 2
SEQ = 8
EMBED = 32
NUM_HEADS = 4
FFN = 64
NUM_LAYERS = 2
LN_EPS = 1e-5


# --------------------------- Pallas kernel ----------------------------------
def _layernorm(v, gamma, beta):
    # LayerNormANE: normalize over the channel axis (last axis in (S, C)).
    mu = jnp.mean(v, axis=-1, keepdims=True)
    vc = v - mu
    var = jnp.mean(vc * vc, axis=-1, keepdims=True)
    return vc * lax.rsqrt(var + LN_EPS) * gamma + beta


def gpt_decoder_kernel(
    x_ref, pos_ref, mask_ref,
    wqkv_ref, bqkv_ref, wo_ref, w1_ref, w2_ref, lnb_ref, b1_ref,
    out_ref, *, num_heads, num_layers,
):
    """All decoder layers + final LayerNorm for one batch element.

    x_ref / pos_ref : (S, C)              activations / positional embed
    mask_ref        : (S, S)              additive mask (k_mask + qk_mask)
    wqkv_ref        : (C, 3C)  bf16       fused q|k|v projection weights
    bqkv_ref        : (1, 3C)  f32        fused q|k|v biases
    wo_ref          : (C, C)   bf16       attention output projection
    w1_ref          : (C, F)   bf16       FFN up
    w2_ref          : (F, C)   bf16       FFN down
    lnb_ref         : (8, C)   f32        rows = [g1,t1,g2,t2,gn,tn,bo,b2]
    b1_ref          : (1, F)   f32        FFN up bias
    """
    f32 = jnp.float32
    bf16 = jnp.bfloat16

    x = x_ref[...].astype(f32)          # (S, C)
    pos = pos_ref[...].astype(f32)      # (S, C)
    mask = mask_ref[...].astype(f32)    # (S, S)
    wqkv = wqkv_ref[...]                # (C, 3C) bf16
    bqkv = bqkv_ref[...].astype(f32)    # (1, 3C)
    wo = wo_ref[...]                    # (C, C)  bf16
    w1 = w1_ref[...]                    # (C, F)  bf16
    w2 = w2_ref[...]                    # (F, C)  bf16
    lnb = lnb_ref[...].astype(f32)      # (8, C)
    b1 = b1_ref[...].astype(f32)        # (1, F)

    S, C = x.shape
    H = num_heads
    dh = C // H
    scale = 1.0 / (float(dh) ** 0.5)

    # cheap sublane selects out of the packed (8, C) tile
    g1, t1 = lnb[0:1, :], lnb[1:2, :]
    g2, t2 = lnb[2:3, :], lnb[3:4, :]
    gn, tn = lnb[4:5, :], lnb[5:6, :]
    bo, b2 = lnb[6:7, :], lnb[7:8, :]

    # Positional contribution to q/k is layer-invariant (weights are shared):
    # q = (y+pos)@Wq + bq = y@Wq + bq + pos@Wq  -> hoist pos@W out of the loop.
    pos_qkv = jnp.dot(pos.astype(bf16), wqkv, preferred_element_type=f32)
    pos_q = pos_qkv[:, 0:C]
    pos_k = pos_qkv[:, C:2 * C]

    trans_b = (((1,), (1,)), ((), ()))   # contract last dims: q @ k^T

    for _ in range(num_layers):          # shared weights -> plain unrolled loop
        # --- pre-LN multi-head self-attention (pos added to q/k) ---
        y = _layernorm(x, g1, t1)
        qkv = jnp.dot(y.astype(bf16), wqkv, preferred_element_type=f32) + bqkv
        q = qkv[:, 0:C] + pos_q
        k = qkv[:, C:2 * C] + pos_k
        v = qkv[:, 2 * C:3 * C]

        heads = []
        for h in range(H):               # H = 4, fully unrolled
            lo, hi = h * dh, (h + 1) * dh
            qh = q[:, lo:hi].astype(bf16)
            kh = k[:, lo:hi].astype(bf16)
            vh = v[:, lo:hi].astype(bf16)
            logits = lax.dot_general(qh, kh, trans_b,
                                     preferred_element_type=f32) * scale + mask
            m = jnp.max(logits, axis=-1, keepdims=True)
            p = jnp.exp(logits - m)
            p = p * pl.reciprocal(jnp.sum(p, axis=-1, keepdims=True),
                                  approx=True)
            heads.append(jnp.dot(p.astype(bf16), vh,
                                 preferred_element_type=f32))   # (S, dh)
        o = jnp.concatenate(heads, axis=-1)                      # (S, C)
        attn = jnp.dot(o.astype(bf16), wo, preferred_element_type=f32) + bo
        x = x + attn

        # --- GELU feed-forward ---
        y2 = _layernorm(x, g2, t2)
        h1 = jnp.dot(y2.astype(bf16), w1, preferred_element_type=f32) + b1
        # TODO(synk): PyTorch nn.GELU default is exact erf; tanh approximation
        # used here (difference is below the bf16 matmul noise floor).
        h1 = jax.nn.gelu(h1)
        ffn = jnp.dot(h1.astype(bf16), w2, preferred_element_type=f32) + b2
        x = x + ffn

    # final LayerNormANE (GPT_Decoder.norm)
    out_ref[...] = _layernorm(x, gn, tn).astype(out_ref.dtype)


# ----------------------------- wrapper ---------------------------------------
def _rep_spec(shape):
    """Full-array block, same block for every grid step (weights)."""
    ndim = len(shape)

    def idx(b):
        return (0,) * ndim

    return pl.BlockSpec(shape, idx)


@functools.partial(jax.jit, static_argnames=("num_layers",))
def gpt_decoder_forward(decoder_embed, decoder_pos_embed, decoder_k_mask,
                        decoder_qk_mask, params, num_layers):
    """decoder_embed / decoder_pos_embed: (B, C, 1, S) NCHW-style ANE layout."""
    B, C, _, S = decoder_embed.shape
    H = NUM_HEADS

    # (B, C, 1, S) -> (B, S, C)
    x = jnp.transpose(decoder_embed[:, :, 0, :], (0, 2, 1)).astype(jnp.float32)
    pos = jnp.transpose(decoder_pos_embed[:, :, 0, :], (0, 2, 1)).astype(jnp.float32)

    # combine the additive masks once (head- and layer-invariant)
    mask = (decoder_qk_mask + decoder_k_mask).astype(jnp.float32)   # (B, S, S)

    # Fuse q/k/v weights / biases (trace-time packing, free).
    wqkv = jnp.concatenate([params["wq"], params["wk"], params["wv"]],
                           axis=-1).astype(jnp.bfloat16)            # (C, 3C)
    bqkv = jnp.concatenate([params["bq"], params["bk"], params["bv"]],
                           axis=-1).astype(jnp.float32)             # (1, 3C)
    wo = params["wo"].astype(jnp.bfloat16)                          # (C, C)
    w1 = params["w1"].astype(jnp.bfloat16)                          # (C, F)
    w2 = params["w2"].astype(jnp.bfloat16)                          # (F, C)

    # Pack the eight (1, C) bias / LayerNorm vectors into one aligned (8, C) tile.
    lnb = jnp.concatenate(
        [params["g1"], params["t1"], params["g2"], params["t2"],
         params["gn"], params["tn"], params["bo"], params["b2"]],
        axis=0).astype(jnp.float32)                                  # (8, C)
    b1 = params["b1"].astype(jnp.float32)                            # (1, F)

    seq_spec = pl.BlockSpec((None, S, C), lambda b: (b, 0, 0))
    mask_spec = pl.BlockSpec((None, S, S), lambda b: (b, 0, 0))

    kernel = functools.partial(gpt_decoder_kernel,
                               num_heads=H, num_layers=num_layers)

    out = pl.pallas_call(
        kernel,
        out_shape=jax.ShapeDtypeStruct((B, S, C), jnp.float32),
        grid=(B,),
        in_specs=[seq_spec, seq_spec, mask_spec,
                  _rep_spec(wqkv.shape), _rep_spec(bqkv.shape),
                  _rep_spec(wo.shape), _rep_spec(w1.shape),
                  _rep_spec(w2.shape), _rep_spec(lnb.shape),
                  _rep_spec(b1.shape)],
        out_specs=pl.BlockSpec((None, S, C), lambda b: (b, 0, 0)),
        compiler_params=pltpu.CompilerParams(
            dimension_semantics=("parallel",)),   # megacore: split the batch
    )(x, pos, mask, wqkv, bqkv, wo, w1, w2, lnb, b1)

    # (B, S, C) -> (B, C, 1, S)
    return jnp.transpose(out, (0, 2, 1))[:, :, None, :]


# ----------------------------- param init ------------------------------------
def init_params(key, C, F):
    ks = jax.random.split(key, 6)
    std = 0.02
    return {
        "wq": jax.random.normal(ks[0], (C, C), jnp.float32) * std,
        "wk": jax.random.normal(ks[1], (C, C), jnp.float32) * std,
        "wv": jax.random.normal(ks[2], (C, C), jnp.float32) * std,
        "wo": jax.random.normal(ks[3], (C, C), jnp.float32) * std,
        "w1": jax.random.normal(ks[4], (C, F), jnp.float32) * std,
        "w2": jax.random.normal(ks[5], (F, C), jnp.float32) * std,
        "bq": jnp.zeros((1, C), jnp.float32),
        "bk": jnp.zeros((1, C), jnp.float32),
        "bv": jnp.zeros((1, C), jnp.float32),
        "bo": jnp.zeros((1, C), jnp.float32),
        "b1": jnp.zeros((1, F), jnp.float32),
        "b2": jnp.zeros((1, C), jnp.float32),
        "g1": jnp.ones((1, C), jnp.float32),
        "t1": jnp.zeros((1, C), jnp.float32),
        "g2": jnp.ones((1, C), jnp.float32),
        "t2": jnp.zeros((1, C), jnp.float32),
        "gn": jnp.ones((1, C), jnp.float32),   # final LayerNormANE
        "tn": jnp.zeros((1, C), jnp.float32),
    }


# ------------------------------- main ----------------------------------------
if __name__ == "__main__":
    key = jax.random.PRNGKey(0)
    k_emb, k_pos, k_par = jax.random.split(key, 3)

    # ANE layout inputs: (B, C, 1, S)
    decoder_embed = jax.random.normal(k_emb, (BATCH, EMBED, 1, SEQ), jnp.float32)
    decoder_pos_embed = jax.random.normal(k_pos, (BATCH, EMBED, 1, SEQ), jnp.float32)

    # additive masks: key padding mask (all valid) and causal qk mask
    decoder_k_mask = jnp.zeros((BATCH, 1, SEQ), jnp.float32)
    causal = jnp.where(jnp.tril(jnp.ones((SEQ, SEQ), jnp.float32)) > 0, 0.0, -1e4)
    decoder_qk_mask = jnp.broadcast_to(causal, (BATCH, SEQ, SEQ))

    params = init_params(k_par, EMBED, FFN)

    # TODO(synk): return_intermediate / early_exit_from_layer_idx are trivial
    # Python-level control flow over the same fused kernel (loop count /
    # stacking per-layer norms); only the default full-depth path is exercised.
    out = gpt_decoder_forward(decoder_embed, decoder_pos_embed,
                              decoder_k_mask, decoder_qk_mask,
                              params, NUM_LAYERS)
    out = jax.block_until_ready(out)
    assert out.shape == (BATCH, EMBED, 1, SEQ), out.shape
    assert bool(jnp.all(jnp.isfinite(out)))
    print("KERNEL_OK")
</pallas_src>

<mosaic_0001>
module attributes {stable_mosaic.version = 11 : i64} {
  func.func @gpt_decoder_kernel(%arg0: i32, %arg1: memref<1x8x32xf32, #tpu.memory_space<vmem>>, %arg2: memref<1x8x32xf32, #tpu.memory_space<vmem>>, %arg3: memref<1x8x8xf32, #tpu.memory_space<vmem>>, %arg4: memref<32x96xbf16, #tpu.memory_space<vmem>>, %arg5: memref<1x96xf32, #tpu.memory_space<vmem>>, %arg6: memref<32x32xbf16, #tpu.memory_space<vmem>>, %arg7: memref<32x64xbf16, #tpu.memory_space<vmem>>, %arg8: memref<64x32xbf16, #tpu.memory_space<vmem>>, %arg9: memref<8x32xf32, #tpu.memory_space<vmem>>, %arg10: memref<1x64xf32, #tpu.memory_space<vmem>>, %arg11: memref<1x8x32xf32, #tpu.memory_space<vmem>>) attributes {dimension_semantics = [#tpu.dimension_semantics<parallel>], iteration_bounds = array<i64: 2>, scalar_prefetch = 0 : i64, scratch_operands = 0 : i64, tpu.core_type = #tpu.core_type<tc>, window_params = [{transform_indices = @transform_0, window_bounds = array<i64: 1, 8, 32>}, {transform_indices = @transform_1, window_bounds = array<i64: 1, 8, 32>}, {transform_indices = @transform_2, window_bounds = array<i64: 1, 8, 8>}, {pipeline_mode = #tpu.pipeline_mode<synchronous>, transform_indices = @transform_3, window_bounds = array<i64: 32, 96>}, {pipeline_mode = #tpu.pipeline_mode<synchronous>, transform_indices = @transform_4, window_bounds = array<i64: 1, 96>}, {pipeline_mode = #tpu.pipeline_mode<synchronous>, transform_indices = @transform_5, window_bounds = array<i64: 32, 32>}, {pipeline_mode = #tpu.pipeline_mode<synchronous>, transform_indices = @transform_6, window_bounds = array<i64: 32, 64>}, {pipeline_mode = #tpu.pipeline_mode<synchronous>, transform_indices = @transform_7, window_bounds = array<i64: 64, 32>}, {pipeline_mode = #tpu.pipeline_mode<synchronous>, transform_indices = @transform_8, window_bounds = array<i64: 8, 32>}, {pipeline_mode = #tpu.pipeline_mode<synchronous>, transform_indices = @transform_9, window_bounds = array<i64: 1, 64>}, {transform_indices = @transform_10, window_bounds = array<i64: 1, 8, 32>}]} {
    %c0 = arith.constant 0 : index
    %c0_0 = arith.constant 0 : index
    %c0_1 = arith.constant 0 : index
    %0 = vector.load %arg1[%c0, %c0_0, %c0_1] : memref<1x8x32xf32, #tpu.memory_space<vmem>>, vector<1x8x32xf32>
    %1 = vector.shape_cast %0 : vector<1x8x32xf32> to vector<8x32xf32>
    %c0_2 = arith.constant 0 : index
    %c0_3 = arith.constant 0 : index
    %c0_4 = arith.constant 0 : index
    %2 = vector.load %arg2[%c0_2, %c0_3, %c0_4] : memref<1x8x32xf32, #tpu.memory_space<vmem>>, vector<1x8x32xf32>
    %3 = vector.shape_cast %2 : vector<1x8x32xf32> to vector<8x32xf32>
    %c0_5 = arith.constant 0 : index
    %c0_6 = arith.constant 0 : index
    %c0_7 = arith.constant 0 : index
    %4 = vector.load %arg3[%c0_5, %c0_6, %c0_7] : memref<1x8x8xf32, #tpu.memory_space<vmem>>, vector<1x8x8xf32>
    %5 = vector.shape_cast %4 : vector<1x8x8xf32> to vector<8x8xf32>
    %c0_8 = arith.constant 0 : index
    %c0_9 = arith.constant 0 : index
    %6 = vector.load %arg4[%c0_8, %c0_9] : memref<32x96xbf16, #tpu.memory_space<vmem>>, vector<32x96xbf16>
    %c0_10 = arith.constant 0 : index
    %c0_11 = arith.constant 0 : index
    %7 = vector.load %arg5[%c0_10, %c0_11] : memref<1x96xf32, #tpu.memory_space<vmem>>, vector<1x96xf32>
    %c0_12 = arith.constant 0 : index
    %c0_13 = arith.constant 0 : index
    %8 = vector.load %arg6[%c0_12, %c0_13] : memref<32x32xbf16, #tpu.memory_space<vmem>>, vector<32x32xbf16>
    %c0_14 = arith.constant 0 : index
    %c0_15 = arith.constant 0 : index
    %9 = vector.load %arg7[%c0_14, %c0_15] : memref<32x64xbf16, #tpu.memory_space<vmem>>, vector<32x64xbf16>
    %c0_16 = arith.constant 0 : index
    %c0_17 = arith.constant 0 : index
    %10 = vector.load %arg8[%c0_16, %c0_17] : memref<64x32xbf16, #tpu.memory_space<vmem>>, vector<64x32xbf16>
    %c0_18 = arith.constant 0 : index
    %c0_19 = arith.constant 0 : index
    %11 = vector.load %arg9[%c0_18, %c0_19] : memref<8x32xf32, #tpu.memory_space<vmem>>, vector<8x32xf32>
    %c0_20 = arith.constant 0 : index
    %c0_21 = arith.constant 0 : index
    %12 = vector.load %arg10[%c0_20, %c0_21] : memref<1x64xf32, #tpu.memory_space<vmem>>, vector<1x64xf32>
    %13 = vector.extract_strided_slice %11 {offsets = [0, 0], sizes = [1, 32], strides = [1, 1]} : vector<8x32xf32> to vector<1x32xf32>
    %14 = vector.extract_strided_slice %11 {offsets = [1, 0], sizes = [1, 32], strides = [1, 1]} : vector<8x32xf32> to vector<1x32xf32>
    %15 = vector.extract_strided_slice %11 {offsets = [2, 0], sizes = [1, 32], strides = [1, 1]} : vector<8x32xf32> to vector<1x32xf32>
    %16 = vector.extract_strided_slice %11 {offsets = [3, 0], sizes = [1, 32], strides = [1, 1]} : vector<8x32xf32> to vector<1x32xf32>
    %17 = vector.extract_strided_slice %11 {offsets = [4, 0], sizes = [1, 32], strides = [1, 1]} : vector<8x32xf32> to vector<1x32xf32>
    %18 = vector.extract_strided_slice %11 {offsets = [5, 0], sizes = [1, 32], strides = [1, 1]} : vector<8x32xf32> to vector<1x32xf32>
    %19 = vector.extract_strided_slice %11 {offsets = [6, 0], sizes = [1, 32], strides = [1, 1]} : vector<8x32xf32> to vector<1x32xf32>
    %20 = vector.extract_strided_slice %11 {offsets = [7, 0], sizes = [1, 32], strides = [1, 1]} : vector<8x32xf32> to vector<1x32xf32>
    %21 = arith.truncf %3 : vector<8x32xf32> to vector<8x32xbf16>
    %cst = arith.constant dense<0.000000e+00> : vector<8x96xf32>
    %22 = tpu.matmul %21, %6, %cst {dimension_numbers = #tpu.dot_dimension_numbers<[1], [0], [0], [1], [0, 0, 1, 1], [], []>} : vector<8x32xbf16>, vector<32x96xbf16>, vector<8x96xf32> -> vector<8x96xf32>
    %23 = vector.extract_strided_slice %22 {offsets = [0, 0], sizes = [8, 32], strides = [1, 1]} : vector<8x96xf32> to vector<8x32xf32>
    %24 = vector.extract_strided_slice %22 {offsets = [0, 32], sizes = [8, 32], strides = [1, 1]} : vector<8x96xf32> to vector<8x32xf32>
    %cst_22 = arith.constant dense<0.000000e+00> : vector<8xf32>
    %25 = vector.multi_reduction <add>, %1, %cst_22 [1] : vector<8x32xf32> to vector<8xf32>
    %26 = vector.shape_cast %25 : vector<8xf32> to vector<8x1xf32>
    %cst_23 = arith.constant 3.200000e+01 : f32
    %27 = vector.broadcast %cst_23 : f32 to vector<8x1xf32>
    %28 = arith.divf %26, %27 : vector<8x1xf32>
    %29 = vector.broadcast %28 : vector<8x1xf32> to vector<8x32xf32>
    %30 = arith.subf %1, %29 : vector<8x32xf32>
    %31 = arith.mulf %30, %30 : vector<8x32xf32>
    %cst_24 = arith.constant dense<0.000000e+00> : vector<8xf32>
    %32 = vector.multi_reduction <add>, %31, %cst_24 [1] : vector<8x32xf32> to vector<8xf32>
    %33 = vector.shape_cast %32 : vector<8xf32> to vector<8x1xf32>
    %cst_25 = arith.constant 3.200000e+01 : f32
    %34 = vector.broadcast %cst_25 : f32 to vector<8x1xf32>
    %35 = arith.divf %33, %34 : vector<8x1xf32>
    %cst_26 = arith.constant 9.99999974E-6 : f32
    %36 = vector.broadcast %cst_26 : f32 to vector<8x1xf32>
    %37 = arith.addf %35, %36 : vector<8x1xf32>
    %38 = math.rsqrt %37 : vector<8x1xf32>
    %39 = vector.broadcast %38 : vector<8x1xf32> to vector<8x32xf32>
    %40 = arith.mulf %30, %39 : vector<8x32xf32>
    %41 = vector.broadcast %13 : vector<1x32xf32> to vector<8x32xf32>
    %42 = arith.mulf %40, %41 : vector<8x32xf32>
    %43 = vector.broadcast %14 : vector<1x32xf32> to vector<8x32xf32>
    %44 = arith.addf %42, %43 : vector<8x32xf32>
    %45 = arith.truncf %44 : vector<8x32xf32> to vector<8x32xbf16>
    %cst_27 = arith.constant dense<0.000000e+00> : vector<8x96xf32>
    %46 = tpu.matmul %45, %6, %cst_27 {dimension_numbers = #tpu.dot_dimension_numbers<[1], [0], [0], [1], [0, 0, 1, 1], [], []>} : vector<8x32xbf16>, vector<32x96xbf16>, vector<8x96xf32> -> vector<8x96xf32>
    %47 = vector.broadcast %7 : vector<1x96xf32> to vector<8x96xf32>
    %48 = arith.addf %46, %47 : vector<8x96xf32>
    %49 = vector.extract_strided_slice %48 {offsets = [0, 0], sizes = [8, 32], strides = [1, 1]} : vector<8x96xf32> to vector<8x32xf32>
    %50 = arith.addf %49, %23 : vector<8x32xf32>
    %51 = vector.extract_strided_slice %48 {offsets = [0, 32], sizes = [8, 32], strides = [1, 1]} : vector<8x96xf32> to vector<8x32xf32>
    %52 = arith.addf %51, %24 : vector<8x32xf32>
    %53 = vector.extract_strided_slice %48 {offsets = [0, 64], sizes = [8, 32], strides = [1, 1]} : vector<8x96xf32> to vector<8x32xf32>
    %54 = vector.extract_strided_slice %50 {offsets = [0, 0], sizes = [8, 8], strides = [1, 1]} : vector<8x32xf32> to vector<8x8xf32>
    %55 = arith.truncf %54 : vector<8x8xf32> to vector<8x8xbf16>
    %56 = vector.extract_strided_slice %52 {offsets = [0, 0], sizes = [8, 8], strides = [1, 1]} : vector<8x32xf32> to vector<8x8xf32>
    %57 = arith.truncf %56 : vector<8x8xf32> to vector<8x8xbf16>
    %58 = vector.extract_strided_slice %53 {offsets = [0, 0], sizes = [8, 8], strides = [1, 1]} : vector<8x32xf32> to vector<8x8xf32>
    %59 = arith.truncf %58 : vector<8x8xf32> to vector<8x8xbf16>
    %cst_28 = arith.constant dense<0.000000e+00> : vector<8x8xf32>
    %60 = tpu.matmul %55, %57, %cst_28 {dimension_numbers = #tpu.dot_dimension_numbers<[1], [1], [0], [0], [0, 0, 1, 0], [], []>} : vector<8x8xbf16>, vector<8x8xbf16>, vector<8x8xf32> -> vector<8x8xf32>
    %cst_29 = arith.constant 0.353553385 : f32
    %61 = vector.broadcast %cst_29 : f32 to vector<8x8xf32>
    %62 = arith.mulf %60, %61 : vector<8x8xf32>
    %63 = arith.addf %62, %5 : vector<8x8xf32>
    %cst_30 = arith.constant dense<0xFF800000> : vector<8xf32>
    %64 = vector.multi_reduction <maximumf>, %63, %cst_30 [1] : vector<8x8xf32> to vector<8xf32>
    %65 = vector.shape_cast %64 : vector<8xf32> to vector<8x1xf32>
    %66 = vector.broadcast %65 : vector<8x1xf32> to vector<8x8xf32>
    %67 = arith.subf %63, %66 : vector<8x8xf32>
    %68 = math.exp %67 : vector<8x8xf32>
    %cst_31 = arith.constant dense<0.000000e+00> : vector<8xf32>
    %69 = vector.multi_reduction <add>, %68, %cst_31 [1] : vector<8x8xf32> to vector<8xf32>
    %70 = vector.shape_cast %69 : vector<8xf32> to vector<8x1xf32>
    %71 = tpu.reciprocal %70 {approx = true} : vector<8x1xf32> -> vector<8x1xf32>
    %72 = vector.broadcast %71 : vector<8x1xf32> to vector<8x8xf32>
    %73 = arith.mulf %68, %72 : vector<8x8xf32>
    %74 = arith.truncf %73 : vector<8x8xf32> to vector<8x8xbf16>
    %cst_32 = arith.constant dense<0.000000e+00> : vector<8x8xf32>
    %75 = tpu.matmul %74, %59, %cst_32 {dimension_numbers = #tpu.dot_dimension_numbers<[1], [0], [0], [1], [0, 0, 1, 1], [], []>} : vector<8x8xbf16>, vector<8x8xbf16>, vector<8x8xf32> -> vector<8x8xf32>
    %76 = vector.extract_strided_slice %50 {offsets = [0, 8], sizes = [8, 8], strides = [1, 1]} : vector<8x32xf32> to vector<8x8xf32>
    %77 = arith.truncf %76 : vector<8x8xf32> to vector<8x8xbf16>
    %78 = vector.extract_strided_slice %52 {offsets = [0, 8], sizes = [8, 8], strides = [1, 1]} : vector<8x32xf32> to vector<8x8xf32>
    %79 = arith.truncf %78 : vector<8x8xf32> to vector<8x8xbf16>
    %80 = vector.extract_strided_slice %53 {offsets = [0, 8], sizes = [8, 8], strides = [1, 1]} : vector<8x32xf32> to vector<8x8xf32>
    %81 = arith.truncf %80 : vector<8x8xf32> to vector<8x8xbf16>
    %cst_33 = arith.constant dense<0.000000e+00> : vector<8x8xf32>
    %82 = tpu.matmul %77, %79, %cst_33 {dimension_numbers = #tpu.dot_dimension_numbers<[1], [1], [0], [0], [0, 0, 1, 0], [], []>} : vector<8x8xbf16>, vector<8x8xbf16>, vector<8x8xf32> -> vector<8x8xf32>
    %cst_34 = arith.constant 0.353553385 : f32
    %83 = vector.broadcast %cst_34 : f32 to vector<8x8xf32>
    %84 = arith.mulf %82, %83 : vector<8x8xf32>
    %85 = arith.addf %84, %5 : vector<8x8xf32>
    %cst_35 = arith.constant dense<0xFF800000> : vector<8xf32>
    %86 = vector.multi_reduction <maximumf>, %85, %cst_35 [1] : vector<8x8xf32> to vector<8xf32>
    %87 = vector.shape_cast %86 : vector<8xf32> to vector<8x1xf32>
    %88 = vector.broadcast %87 : vector<8x1xf32> to vector<8x8xf32>
    %89 = arith.subf %85, %88 : vector<8x8xf32>
    %90 = math.exp %89 : vector<8x8xf32>
    %cst_36 = arith.constant dense<0.000000e+00> : vector<8xf32>
    %91 = vector.multi_reduction <add>, %90, %cst_36 [1] : vector<8x8xf32> to vector<8xf32>
    %92 = vector.shape_cast %91 : vector<8xf32> to vector<8x1xf32>
    %93 = tpu.reciprocal %92 {approx = true} : vector<8x1xf32> -> vector<8x1xf32>
    %94 = vector.broadcast %93 : vector<8x1xf32> to vector<8x8xf32>
    %95 = arith.mulf %90, %94 : vector<8x8xf32>
    %96 = arith.truncf %95 : vector<8x8xf32> to vector<8x8xbf16>
    %cst_37 = arith.constant dense<0.000000e+00> : vector<8x8xf32>
    %97 = tpu.matmul %96, %81, %cst_37 {dimension_numbers = #tpu.dot_dimension_numbers<[1], [0], [0], [1], [0, 0, 1, 1], [], []>} : vector<8x8xbf16>, vector<8x8xbf16>, vector<8x8xf32> -> vector<8x8xf32>
    %98 = vector.extract_strided_slice %50 {offsets = [0, 16], sizes = [8, 8], strides = [1, 1]} : vector<8x32xf32> to vector<8x8xf32>
    %99 = arith.truncf %98 : vector<8x8xf32> to vector<8x8xbf16>
    %100 = vector.extract_strided_slice %52 {offsets = [0, 16], sizes = [8, 8], strides = [1, 1]} : vector<8x32xf32> to vector<8x8xf32>
    %101 = arith.truncf %100 : vector<8x8xf32> to vector<8x8xbf16>
    %102 = vector.extract_strided_slice %53 {offsets = [0, 16], sizes = [8, 8], strides = [1, 1]} : vector<8x32xf32> to vector<8x8xf32>
    %103 = arith.truncf %102 : vector<8x8xf32> to vector<8x8xbf16>
    %cst_38 = arith.constant dense<0.000000e+00> : vector<8x8xf32>
    %104 = tpu.matmul %99, %101, %cst_38 {dimension_numbers = #tpu.dot_dimension_numbers<[1], [1], [0], [0], [0, 0, 1, 0], [], []>} : vector<8x8xbf16>, vector<8x8xbf16>, vector<8x8xf32> -> vector<8x8xf32>
    %cst_39 = arith.constant 0.353553385 : f32
    %105 = vector.broadcast %cst_39 : f32 to vector<8x8xf32>
    %106 = arith.mulf %104, %105 : vector<8x8xf32>
    %107 = arith.addf %106, %5 : vector<8x8xf32>
    %cst_40 = arith.constant dense<0xFF800000> : vector<8xf32>
    %108 = vector.multi_reduction <maximumf>, %107, %cst_40 [1] : vector<8x8xf32> to vector<8xf32>
    %109 = vector.shape_cast %108 : vector<8xf32> to vector<8x1xf32>
    %110 = vector.broadcast %109 : vector<8x1xf32> to vector<8x8xf32>
    %111 = arith.subf %107, %110 : vector<8x8xf32>
    %112 = math.exp %111 : vector<8x8xf32>
    %cst_41 = arith.constant dense<0.000000e+00> : vector<8xf32>
    %113 = vector.multi_reduction <add>, %112, %cst_41 [1] : vector<8x8xf32> to vector<8xf32>
    %114 = vector.shape_cast %113 : vector<8xf32> to vector<8x1xf32>
    %115 = tpu.reciprocal %114 {approx = true} : vector<8x1xf32> -> vector<8x1xf32>
    %116 = vector.broadcast %115 : vector<8x1xf32> to vector<8x8xf32>
    %117 = arith.mulf %112, %116 : vector<8x8xf32>
    %118 = arith.truncf %117 : vector<8x8xf32> to vector<8x8xbf16>
    %cst_42 = arith.constant dense<0.000000e+00> : vector<8x8xf32>
    %119 = tpu.matmul %118, %103, %cst_42 {dimension_numbers = #tpu.dot_dimension_numbers<[1], [0], [0], [1], [0, 0, 1, 1], [], []>} : vector<8x8xbf16>, vector<8x8xbf16>, vector<8x8xf32> -> vector<8x8xf32>
    %120 = vector.extract_strided_slice %50 {offsets = [0, 24], sizes = [8, 8], strides = [1, 1]} : vector<8x32xf32> to vector<8x8xf32>
    %121 = arith.truncf %120 : vector<8x8xf32> to vector<8x8xbf16>
    %122 = vector.extract_strided_slice %52 {offsets = [0, 24], sizes = [8, 8], strides = [1, 1]} : vector<8x32xf32> to vector<8x8xf32>
    %123 = arith.truncf %122 : vector<8x8xf32> to vector<8x8xbf16>
    %124 = vector.extract_strided_slice %53 {offsets = [0, 24], sizes = [8, 8], strides = [1, 1]} : vector<8x32xf32> to vector<8x8xf32>
    %125 = arith.truncf %124 : vector<8x8xf32> to vector<8x8xbf16>
    %cst_43 = arith.constant dense<0.000000e+00> : vector<8x8xf32>
    %126 = tpu.matmul %121, %123, %cst_43 {dimension_numbers = #tpu.dot_dimension_numbers<[1], [1], [0], [0], [0, 0, 1, 0], [], []>} : vector<8x8xbf16>, vector<8x8xbf16>, vector<8x8xf32> -> vector<8x8xf32>
    %cst_44 = arith.constant 0.353553385 : f32
    %127 = vector.broadcast %cst_44 : f32 to vector<8x8xf32>
    %128 = arith.mulf %126, %127 : vector<8x8xf32>
    %129 = arith.addf %128, %5 : vector<8x8xf32>
    %cst_45 = arith.constant dense<0xFF800000> : vector<8xf32>
    %130 = vector.multi_reduction <maximumf>, %129, %cst_45 [1] : vector<8x8xf32> to vector<8xf32>
    %131 = vector.shape_cast %130 : vector<8xf32> to vector<8x1xf32>
    %132 = vector.broadcast %131 : vector<8x1xf32> to vector<8x8xf32>
    %133 = arith.subf %129, %132 : vector<8x8xf32>
    %134 = math.exp %133 : vector<8x8xf32>
    %cst_46 = arith.constant dense<0.000000e+00> : vector<8xf32>
    %135 = vector.multi_reduction <add>, %134, %cst_46 [1] : vector<8x8xf32> to vector<8xf32>
    %136 = vector.shape_cast %135 : vector<8xf32> to vector<8x1xf32>
    %137 = tpu.reciprocal %136 {approx = true} : vector<8x1xf32> -> vector<8x1xf32>
    %138 = vector.broadcast %137 : vector<8x1xf32> to vector<8x8xf32>
    %139 = arith.mulf %134, %138 : vector<8x8xf32>
    %140 = arith.truncf %139 : vector<8x8xf32> to vector<8x8xbf16>
    %cst_47 = arith.constant dense<0.000000e+00> : vector<8x8xf32>
    %141 = tpu.matmul %140, %125, %cst_47 {dimension_numbers = #tpu.dot_dimension_numbers<[1], [0], [0], [1], [0, 0, 1, 1], [], []>} : vector<8x8xbf16>, vector<8x8xbf16>, vector<8x8xf32> -> vector<8x8xf32>
    %142 = tpu.concatenate %75, %97, %119, %141 in 1 : vector<8x8xf32>, vector<8x8xf32>, vector<8x8xf32>, vector<8x8xf32> -> vector<8x32xf32>
    %143 = arith.truncf %142 : vector<8x32xf32> to vector<8x32xbf16>
    %cst_48 = arith.constant dense<0.000000e+00> : vector<8x32xf32>
    %144 = tpu.matmul %143, %8, %cst_48 {dimension_numbers = #tpu.dot_dimension_numbers<[1], [0], [0], [1], [0, 0, 1, 1], [], []>} : vector<8x32xbf16>, vector<32x32xbf16>, vector<8x32xf32> -> vector<8x32xf32>
    %145 = vector.broadcast %19 : vector<1x32xf32> to vector<8x32xf32>
    %146 = arith.addf %144, %145 : vector<8x32xf32>
    %147 = arith.addf %1, %146 : vector<8x32xf32>
    %cst_49 = arith.constant dense<0.000000e+00> : vector<8xf32>
    %148 = vector.multi_reduction <add>, %147, %cst_49 [1] : vector<8x32xf32> to vector<8xf32>
    %149 = vector.shape_cast %148 : vector<8xf32> to vector<8x1xf32>
    %cst_50 = arith.constant 3.200000e+01 : f32
    %150 = vector.broadcast %cst_50 : f32 to vector<8x1xf32>
    %151 = arith.divf %149, %150 : vector<8x1xf32>
    %152 = vector.broadcast %151 : vector<8x1xf32> to vector<8x32xf32>
    %153 = arith.subf %147, %152 : vector<8x32xf32>
    %154 = arith.mulf %153, %153 : vector<8x32xf32>
    %cst_51 = arith.constant dense<0.000000e+00> : vector<8xf32>
    %155 = vector.multi_reduction <add>, %154, %cst_51 [1] : vector<8x32xf32> to vector<8xf32>
    %156 = vector.shape_cast %155 : vector<8xf32> to vector<8x1xf32>
    %cst_52 = arith.constant 3.200000e+01 : f32
    %157 = vector.broadcast %cst_52 : f32 to vector<8x1xf32>
    %158 = arith.divf %156, %157 : vector<8x1xf32>
    %cst_53 = arith.constant 9.99999974E-6 : f32
    %159 = vector.broadcast %cst_53 : f32 to vector<8x1xf32>
    %160 = arith.addf %158, %159 : vector<8x1xf32>
    %161 = math.rsqrt %160 : vector<8x1xf32>
    %162 = vector.broadcast %161 : vector<8x1xf32> to vector<8x32xf32>
    %163 = arith.mulf %153, %162 : vector<8x32xf32>
    %164 = vector.broadcast %15 : vector<1x32xf32> to vector<8x32xf32>
    %165 = arith.mulf %163, %164 : vector<8x32xf32>
    %166 = vector.broadcast %16 : vector<1x32xf32> to vector<8x32xf32>
    %167 = arith.addf %165, %166 : vector<8x32xf32>
    %168 = arith.truncf %167 : vector<8x32xf32> to vector<8x32xbf16>
    %cst_54 = arith.constant dense<0.000000e+00> : vector<8x64xf32>
    %169 = tpu.matmul %168, %9, %cst_54 {dimension_numbers = #tpu.dot_dimension_numbers<[1], [0], [0], [1], [0, 0, 1, 1], [], []>} : vector<8x32xbf16>, vector<32x64xbf16>, vector<8x64xf32> -> vector<8x64xf32>
    %170 = vector.broadcast %12 : vector<1x64xf32> to vector<8x64xf32>
    %171 = arith.addf %169, %170 : vector<8x64xf32>
    %172 = arith.mulf %171, %171 : vector<8x64xf32>
    %173 = arith.mulf %171, %172 : vector<8x64xf32>
    %cst_55 = arith.constant 4.471500e-02 : f32
    %174 = vector.broadcast %cst_55 : f32 to vector<8x64xf32>
    %175 = arith.mulf %174, %173 : vector<8x64xf32>
    %176 = arith.addf %171, %175 : vector<8x64xf32>
    %cst_56 = arith.constant 0.797884583 : f32
    %177 = vector.broadcast %cst_56 : f32 to vector<8x64xf32>
    %178 = arith.mulf %177, %176 : vector<8x64xf32>
    %179 = math.tanh %178 : vector<8x64xf32>
    %cst_57 = arith.constant 1.000000e+00 : f32
    %180 = vector.broadcast %cst_57 : f32 to vector<8x64xf32>
    %181 = arith.addf %180, %179 : vector<8x64xf32>
    %cst_58 = arith.constant 5.000000e-01 : f32
    %182 = vector.broadcast %cst_58 : f32 to vector<8x64xf32>
    %183 = arith.mulf %182, %181 : vector<8x64xf32>
    %184 = arith.mulf %171, %183 : vector<8x64xf32>
    %185 = arith.truncf %184 : vector<8x64xf32> to vector<8x64xbf16>
    %cst_59 = arith.constant dense<0.000000e+00> : vector<8x32xf32>
    %186 = tpu.matmul %185, %10, %cst_59 {dimension_numbers = #tpu.dot_dimension_numbers<[1], [0], [0], [1], [0, 0, 1, 1], [], []>} : vector<8x64xbf16>, vector<64x32xbf16>, vector<8x32xf32> -> vector<8x32xf32>
    %187 = vector.broadcast %20 : vector<1x32xf32> to vector<8x32xf32>
    %188 = arith.addf %186, %187 : vector<8x32xf32>
    %189 = arith.addf %147, %188 : vector<8x32xf32>
    %cst_60 = arith.constant dense<0.000000e+00> : vector<8xf32>
    %190 = vector.multi_reduction <add>, %189, %cst_60 [1] : vector<8x32xf32> to vector<8xf32>
    %191 = vector.shape_cast %190 : vector<8xf32> to vector<8x1xf32>
    %cst_61 = arith.constant 3.200000e+01 : f32
    %192 = vector.broadcast %cst_61 : f32 to vector<8x1xf32>
    %193 = arith.divf %191, %192 : vector<8x1xf32>
    %194 = vector.broadcast %193 : vector<8x1xf32> to vector<8x32xf32>
    %195 = arith.subf %189, %194 : vector<8x32xf32>
    %196 = arith.mulf %195, %195 : vector<8x32xf32>
    %cst_62 = arith.constant dense<0.000000e+00> : vector<8xf32>
    %197 = vector.multi_reduction <add>, %196, %cst_62 [1] : vector<8x32xf32> to vector<8xf32>
    %198 = vector.shape_cast %197 : vector<8xf32> to vector<8x1xf32>
    %cst_63 = arith.constant 3.200000e+01 : f32
    %199 = vector.broadcast %cst_63 : f32 to vector<8x1xf32>
    %200 = arith.divf %198, %199 : vector<8x1xf32>
    %cst_64 = arith.constant 9.99999974E-6 : f32
    %201 = vector.broadcast %cst_64 : f32 to vector<8x1xf32>
    %202 = arith.addf %200, %201 : vector<8x1xf32>
    %203 = math.rsqrt %202 : vector<8x1xf32>
    %204 = vector.broadcast %203 : vector<8x1xf32> to vector<8x32xf32>
    %205 = arith.mulf %195, %204 : vector<8x32xf32>
    %206 = vector.broadcast %13 : vector<1x32xf32> to vector<8x32xf32>
    %207 = arith.mulf %205, %206 : vector<8x32xf32>
    %208 = vector.broadcast %14 : vector<1x32xf32> to vector<8x32xf32>
    %209 = arith.addf %207, %208 : vector<8x32xf32>
    %210 = arith.truncf %209 : vector<8x32xf32> to vector<8x32xbf16>
    %cst_65 = arith.constant dense<0.000000e+00> : vector<8x96xf32>
    %211 = tpu.matmul %210, %6, %cst_65 {dimension_numbers = #tpu.dot_dimension_numbers<[1], [0], [0], [1], [0, 0, 1, 1], [], []>} : vector<8x32xbf16>, vector<32x96xbf16>, vector<8x96xf32> -> vector<8x96xf32>
    %212 = vector.broadcast %7 : vector<1x96xf32> to vector<8x96xf32>
    %213 = arith.addf %211, %212 : vector<8x96xf32>
    %214 = vector.extract_strided_slice %213 {offsets = [0, 0], sizes = [8, 32], strides = [1, 1]} : vector<8x96xf32> to vector<8x32xf32>
    %215 = arith.addf %214, %23 : vector<8x32xf32>
    %216 = vector.extract_strided_slice %213 {offsets = [0, 32], sizes = [8, 32], strides = [1, 1]} : vector<8x96xf32> to vector<8x32xf32>
    %217 = arith.addf %216, %24 : vector<8x32xf32>
    %218 = vector.extract_strided_slice %213 {offsets = [0, 64], sizes = [8, 32], strides = [1, 1]} : vector<8x96xf32> to vector<8x32xf32>
    %219 = vector.extract_strided_slice %215 {offsets = [0, 0], sizes = [8, 8], strides = [1, 1]} : vector<8x32xf32> to vector<8x8xf32>
    %220 = arith.truncf %219 : vector<8x8xf32> to vector<8x8xbf16>
    %221 = vector.extract_strided_slice %217 {offsets = [0, 0], sizes = [8, 8], strides = [1, 1]} : vector<8x32xf32> to vector<8x8xf32>
    %222 = arith.truncf %221 : vector<8x8xf32> to vector<8x8xbf16>
    %223 = vector.extract_strided_slice %218 {offsets = [0, 0], sizes = [8, 8], strides = [1, 1]} : vector<8x32xf32> to vector<8x8xf32>
    %224 = arith.truncf %223 : vector<8x8xf32> to vector<8x8xbf16>
    %cst_66 = arith.constant dense<0.000000e+00> : vector<8x8xf32>
    %225 = tpu.matmul %220, %222, %cst_66 {dimension_numbers = #tpu.dot_dimension_numbers<[1], [1], [0], [0], [0, 0, 1, 0], [], []>} : vector<8x8xbf16>, vector<8x8xbf16>, vector<8x8xf32> -> vector<8x8xf32>
    %cst_67 = arith.constant 0.353553385 : f32
    %226 = vector.broadcast %cst_67 : f32 to vector<8x8xf32>
    %227 = arith.mulf %225, %226 : vector<8x8xf32>
    %228 = arith.addf %227, %5 : vector<8x8xf32>
    %cst_68 = arith.constant dense<0xFF800000> : vector<8xf32>
    %229 = vector.multi_reduction <maximumf>, %228, %cst_68 [1] : vector<8x8xf32> to vector<8xf32>
    %230 = vector.shape_cast %229 : vector<8xf32> to vector<8x1xf32>
    %231 = vector.broadcast %230 : vector<8x1xf32> to vector<8x8xf32>
    %232 = arith.subf %228, %231 : vector<8x8xf32>
    %233 = math.exp %232 : vector<8x8xf32>
    %cst_69 = arith.constant dense<0.000000e+00> : vector<8xf32>
    %234 = vector.multi_reduction <add>, %233, %cst_69 [1] : vector<8x8xf32> to vector<8xf32>
    %235 = vector.shape_cast %234 : vector<8xf32> to vector<8x1xf32>
    %236 = tpu.reciprocal %235 {approx = true} : vector<8x1xf32> -> vector<8x1xf32>
    %237 = vector.broadcast %236 : vector<8x1xf32> to vector<8x8xf32>
    %238 = arith.mulf %233, %237 : vector<8x8xf32>
    %239 = arith.truncf %238 : vector<8x8xf32> to vector<8x8xbf16>
    %cst_70 = arith.constant dense<0.000000e+00> : vector<8x8xf32>
    %240 = tpu.matmul %239, %224, %cst_70 {dimension_numbers = #tpu.dot_dimension_numbers<[1], [0], [0], [1], [0, 0, 1, 1], [], []>} : vector<8x8xbf16>, vector<8x8xbf16>, vector<8x8xf32> -> vector<8x8xf32>
    %241 = vector.extract_strided_slice %215 {offsets = [0, 8], sizes = [8, 8], strides = [1, 1]} : vector<8x32xf32> to vector<8x8xf32>
    %242 = arith.truncf %241 : vector<8x8xf32> to vector<8x8xbf16>
    %243 = vector.extract_strided_slice %217 {offsets = [0, 8], sizes = [8, 8], strides = [1, 1]} : vector<8x32xf32> to vector<8x8xf32>
    %244 = arith.truncf %243 : vector<8x8xf32> to vector<8x8xbf16>
    %245 = vector.extract_strided_slice %218 {offsets = [0, 8], sizes = [8, 8], strides = [1, 1]} : vector<8x32xf32> to vector<8x8xf32>
    %246 = arith.truncf %245 : vector<8x8xf32> to vector<8x8xbf16>
    %cst_71 = arith.constant dense<0.000000e+00> : vector<8x8xf32>
    %247 = tpu.matmul %242, %244, %cst_71 {dimension_numbers = #tpu.dot_dimension_numbers<[1], [1], [0], [0], [0, 0, 1, 0], [], []>} : vector<8x8xbf16>, vector<8x8xbf16>, vector<8x8xf32> -> vector<8x8xf32>
    %cst_72 = arith.constant 0.353553385 : f32
    %248 = vector.broadcast %cst_72 : f32 to vector<8x8xf32>
    %249 = arith.mulf %247, %248 : vector<8x8xf32>
    %250 = arith.addf %249, %5 : vector<8x8xf32>
    %cst_73 = arith.constant dense<0xFF800000> : vector<8xf32>
    %251 = vector.multi_reduction <maximumf>, %250, %cst_73 [1] : vector<8x8xf32> to vector<8xf32>
    %252 = vector.shape_cast %251 : vector<8xf32> to vector<8x1xf32>
    %253 = vector.broadcast %252 : vector<8x1xf32> to vector<8x8xf32>
    %254 = arith.subf %250, %253 : vector<8x8xf32>
    %255 = math.exp %254 : vector<8x8xf32>
    %cst_74 = arith.constant dense<0.000000e+00> : vector<8xf32>
    %256 = vector.multi_reduction <add>, %255, %cst_74 [1] : vector<8x8xf32> to vector<8xf32>
    %257 = vector.shape_cast %256 : vector<8xf32> to vector<8x1xf32>
    %258 = tpu.reciprocal %257 {approx = true} : vector<8x1xf32> -> vector<8x1xf32>
    %259 = vector.broadcast %258 : vector<8x1xf32> to vector<8x8xf32>
    %260 = arith.mulf %255, %259 : vector<8x8xf32>
    %261 = arith.truncf %260 : vector<8x8xf32> to vector<8x8xbf16>
    %cst_75 = arith.constant dense<0.000000e+00> : vector<8x8xf32>
    %262 = tpu.matmul %261, %246, %cst_75 {dimension_numbers = #tpu.dot_dimension_numbers<[1], [0], [0], [1], [0, 0, 1, 1], [], []>} : vector<8x8xbf16>, vector<8x8xbf16>, vector<8x8xf32> -> vector<8x8xf32>
    %263 = vector.extract_strided_slice %215 {offsets = [0, 16], sizes = [8, 8], strides = [1, 1]} : vector<8x32xf32> to vector<8x8xf32>
    %264 = arith.truncf %263 : vector<8x8xf32> to vector<8x8xbf16>
    %265 = vector.extract_strided_slice %217 {offsets = [0, 16], sizes = [8, 8], strides = [1, 1]} : vector<8x32xf32> to vector<8x8xf32>
    %266 = arith.truncf %265 : vector<8x8xf32> to vector<8x8xbf16>
    %267 = vector.extract_strided_slice %218 {offsets = [0, 16], sizes = [8, 8], strides = [1, 1]} : vector<8x32xf32> to vector<8x8xf32>
    %268 = arith.truncf %267 : vector<8x8xf32> to vector<8x8xbf16>
    %cst_76 = arith.constant dense<0.000000e+00> : vector<8x8xf32>
    %269 = tpu.matmul %264, %266, %cst_76 {dimension_numbers = #tpu.dot_dimension_numbers<[1], [1], [0], [0], [0, 0, 1, 0], [], []>} : vector<8x8xbf16>, vector<8x8xbf16>, vector<8x8xf32> -> vector<8x8xf32>
    %cst_77 = arith.constant 0.353553385 : f32
    %270 = vector.broadcast %cst_77 : f32 to vector<8x8xf32>
    %271 = arith.mulf %269, %270 : vector<8x8xf32>
    %272 = arith.addf %271, %5 : vector<8x8xf32>
    %cst_78 = arith.constant dense<0xFF800000> : vector<8xf32>
    %273 = vector.multi_reduction <maximumf>, %272, %cst_78 [1] : vector<8x8xf32> to vector<8xf32>
    %274 = vector.shape_cast %273 : vector<8xf32> to vector<8x1xf32>
    %275 = vector.broadcast %274 : vector<8x1xf32> to vector<8x8xf32>
    %276 = arith.subf %272, %275 : vector<8x8xf32>
    %277 = math.exp %276 : vector<8x8xf32>
    %cst_79 = arith.constant dense<0.000000e+00> : vector<8xf32>
    %278 = vector.multi_reduction <add>, %277, %cst_79 [1] : vector<8x8xf32> to vector<8xf32>
    %279 = vector.shape_cast %278 : vector<8xf32> to vector<8x1xf32>
    %280 = tpu.reciprocal %279 {approx = true} : vector<8x1xf32> -> vector<8x1xf32>
    %281 = vector.broadcast %280 : vector<8x1xf32> to vector<8x8xf32>
    %282 = arith.mulf %277, %281 : vector<8x8xf32>
    %283 = arith.truncf %282 : vector<8x8xf32> to vector<8x8xbf16>
    %cst_80 = arith.constant dense<0.000000e+00> : vector<8x8xf32>
    %284 = tpu.matmul %283, %268, %cst_80 {dimension_numbers = #tpu.dot_dimension_numbers<[1], [0], [0], [1], [0, 0, 1, 1], [], []>} : vector<8x8xbf16>, vector<8x8xbf16>, vector<8x8xf32> -> vector<8x8xf32>
    %285 = vector.extract_strided_slice %215 {offsets = [0, 24], sizes = [8, 8], strides = [1, 1]} : vector<8x32xf32> to vector<8x8xf32>
    %286 = arith.truncf %285 : vector<8x8xf32> to vector<8x8xbf16>
    %287 = vector.extract_strided_slice %217 {offsets = [0, 24], sizes = [8, 8], strides = [1, 1]} : vector<8x32xf32> to vector<8x8xf32>
    %288 = arith.truncf %287 : vector<8x8xf32> to vector<8x8xbf16>
    %289 = vector.extract_strided_slice %218 {offsets = [0, 24], sizes = [8, 8], strides = [1, 1]} : vector<8x32xf32> to vector<8x8xf32>
    %290 = arith.truncf %289 : vector<8x8xf32> to vector<8x8xbf16>
    %cst_81 = arith.constant dense<0.000000e+00> : vector<8x8xf32>
    %291 = tpu.matmul %286, %288, %cst_81 {dimension_numbers = #tpu.dot_dimension_numbers<[1], [1], [0], [0], [0, 0, 1, 0], [], []>} : vector<8x8xbf16>, vector<8x8xbf16>, vector<8x8xf32> -> vector<8x8xf32>
    %cst_82 = arith.constant 0.353553385 : f32
    %292 = vector.broadcast %cst_82 : f32 to vector<8x8xf32>
    %293 = arith.mulf %291, %292 : vector<8x8xf32>
    %294 = arith.addf %293, %5 : vector<8x8xf32>
    %cst_83 = arith.constant dense<0xFF800000> : vector<8xf32>
    %295 = vector.multi_reduction <maximumf>, %294, %cst_83 [1] : vector<8x8xf32> to vector<8xf32>
    %296 = vector.shape_cast %295 : vector<8xf32> to vector<8x1xf32>
    %297 = vector.broadcast %296 : vector<8x1xf32> to vector<8x8xf32>
    %298 = arith.subf %294, %297 : vector<8x8xf32>
    %299 = math.exp %298 : vector<8x8xf32>
    %cst_84 = arith.constant dense<0.000000e+00> : vector<8xf32>
    %300 = vector.multi_reduction <add>, %299, %cst_84 [1] : vector<8x8xf32> to vector<8xf32>
    %301 = vector.shape_cast %300 : vector<8xf32> to vector<8x1xf32>
    %302 = tpu.reciprocal %301 {approx = true} : vector<8x1xf32> -> vector<8x1xf32>
    %303 = vector.broadcast %302 : vector<8x1xf32> to vector<8x8xf32>
    %304 = arith.mulf %299, %303 : vector<8x8xf32>
    %305 = arith.truncf %304 : vector<8x8xf32> to vector<8x8xbf16>
    %cst_85 = arith.constant dense<0.000000e+00> : vector<8x8xf32>
    %306 = tpu.matmul %305, %290, %cst_85 {dimension_numbers = #tpu.dot_dimension_numbers<[1], [0], [0], [1], [0, 0, 1, 1], [], []>} : vector<8x8xbf16>, vector<8x8xbf16>, vector<8x8xf32> -> vector<8x8xf32>
    %307 = tpu.concatenate %240, %262, %284, %306 in 1 : vector<8x8xf32>, vector<8x8xf32>, vector<8x8xf32>, vector<8x8xf32> -> vector<8x32xf32>
    %308 = arith.truncf %307 : vector<8x32xf32> to vector<8x32xbf16>
    %cst_86 = arith.constant dense<0.000000e+00> : vector<8x32xf32>
    %309 = tpu.matmul %308, %8, %cst_86 {dimension_numbers = #tpu.dot_dimension_numbers<[1], [0], [0], [1], [0, 0, 1, 1], [], []>} : vector<8x32xbf16>, vector<32x32xbf16>, vector<8x32xf32> -> vector<8x32xf32>
    %310 = vector.broadcast %19 : vector<1x32xf32> to vector<8x32xf32>
    %311 = arith.addf %309, %310 : vector<8x32xf32>
    %312 = arith.addf %189, %311 : vector<8x32xf32>
    %cst_87 = arith.constant dense<0.000000e+00> : vector<8xf32>
    %313 = vector.multi_reduction <add>, %312, %cst_87 [1] : vector<8x32xf32> to vector<8xf32>
    %314 = vector.shape_cast %313 : vector<8xf32> to vector<8x1xf32>
    %cst_88 = arith.constant 3.200000e+01 : f32
    %315 = vector.broadcast %cst_88 : f32 to vector<8x1xf32>
    %316 = arith.divf %314, %315 : vector<8x1xf32>
    %317 = vector.broadcast %316 : vector<8x1xf32> to vector<8x32xf32>
    %318 = arith.subf %312, %317 : vector<8x32xf32>
    %319 = arith.mulf %318, %318 : vector<8x32xf32>
    %cst_89 = arith.constant dense<0.000000e+00> : vector<8xf32>
    %320 = vector.multi_reduction <add>, %319, %cst_89 [1] : vector<8x32xf32> to vector<8xf32>
    %321 = vector.shape_cast %320 : vector<8xf32> to vector<8x1xf32>
    %cst_90 = arith.constant 3.200000e+01 : f32
    %322 = vector.broadcast %cst_90 : f32 to vector<8x1xf32>
    %323 = arith.divf %321, %322 : vector<8x1xf32>
    %cst_91 = arith.constant 9.99999974E-6 : f32
    %324 = vector.broadcast %cst_91 : f32 to vector<8x1xf32>
    %325 = arith.addf %323, %324 : vector<8x1xf32>
    %326 = math.rsqrt %325 : vector<8x1xf32>
    %327 = vector.broadcast %326 : vector<8x1xf32> to vector<8x32xf32>
    %328 = arith.mulf %318, %327 : vector<8x32xf32>
    %329 = vector.broadcast %15 : vector<1x32xf32> to vector<8x32xf32>
    %330 = arith.mulf %328, %329 : vector<8x32xf32>
    %331 = vector.broadcast %16 : vector<1x32xf32> to vector<8x32xf32>
    %332 = arith.addf %330, %331 : vector<8x32xf32>
    %333 = arith.truncf %332 : vector<8x32xf32> to vector<8x32xbf16>
    %cst_92 = arith.constant dense<0.000000e+00> : vector<8x64xf32>
    %334 = tpu.matmul %333, %9, %cst_92 {dimension_numbers = #tpu.dot_dimension_numbers<[1], [0], [0], [1], [0, 0, 1, 1], [], []>} : vector<8x32xbf16>, vector<32x64xbf16>, vector<8x64xf32> -> vector<8x64xf32>
    %335 = vector.broadcast %12 : vector<1x64xf32> to vector<8x64xf32>
    %336 = arith.addf %334, %335 : vector<8x64xf32>
    %337 = arith.mulf %336, %336 : vector<8x64xf32>
    %338 = arith.mulf %336, %337 : vector<8x64xf32>
    %cst_93 = arith.constant 4.471500e-02 : f32
    %339 = vector.broadcast %cst_93 : f32 to vector<8x64xf32>
    %340 = arith.mulf %339, %338 : vector<8x64xf32>
    %341 = arith.addf %336, %340 : vector<8x64xf32>
    %cst_94 = arith.constant 0.797884583 : f32
    %342 = vector.broadcast %cst_94 : f32 to vector<8x64xf32>
    %343 = arith.mulf %342, %341 : vector<8x64xf32>
    %344 = math.tanh %343 : vector<8x64xf32>
    %cst_95 = arith.constant 1.000000e+00 : f32
    %345 = vector.broadcast %cst_95 : f32 to vector<8x64xf32>
    %346 = arith.addf %345, %344 : vector<8x64xf32>
    %cst_96 = arith.constant 5.000000e-01 : f32
    %347 = vector.broadcast %cst_96 : f32 to vector<8x64xf32>
    %348 = arith.mulf %347, %346 : vector<8x64xf32>
    %349 = arith.mulf %336, %348 : vector<8x64xf32>
    %350 = arith.truncf %349 : vector<8x64xf32> to vector<8x64xbf16>
    %cst_97 = arith.constant dense<0.000000e+00> : vector<8x32xf32>
    %351 = tpu.matmul %350, %10, %cst_97 {dimension_numbers = #tpu.dot_dimension_numbers<[1], [0], [0], [1], [0, 0, 1, 1], [], []>} : vector<8x64xbf16>, vector<64x32xbf16>, vector<8x32xf32> -> vector<8x32xf32>
    %352 = vector.broadcast %20 : vector<1x32xf32> to vector<8x32xf32>
    %353 = arith.addf %351, %352 : vector<8x32xf32>
    %354 = arith.addf %312, %353 : vector<8x32xf32>
    %cst_98 = arith.constant dense<0.000000e+00> : vector<8xf32>
    %355 = vector.multi_reduction <add>, %354, %cst_98 [1] : vector<8x32xf32> to vector<8xf32>
    %356 = vector.shape_cast %355 : vector<8xf32> to vector<8x1xf32>
    %cst_99 = arith.constant 3.200000e+01 : f32
    %357 = vector.broadcast %cst_99 : f32 to vector<8x1xf32>
    %358 = arith.divf %356, %357 : vector<8x1xf32>
    %359 = vector.broadcast %358 : vector<8x1xf32> to vector<8x32xf32>
    %360 = arith.subf %354, %359 : vector<8x32xf32>
    %361 = arith.mulf %360, %360 : vector<8x32xf32>
    %cst_100 = arith.constant dense<0.000000e+00> : vector<8xf32>
    %362 = vector.multi_reduction <add>, %361, %cst_100 [1] : vector<8x32xf32> to vector<8xf32>
    %363 = vector.shape_cast %362 : vector<8xf32> to vector<8x1xf32>
    %cst_101 = arith.constant 3.200000e+01 : f32
    %364 = vector.broadcast %cst_101 : f32 to vector<8x1xf32>
    %365 = arith.divf %363, %364 : vector<8x1xf32>
    %cst_102 = arith.constant 9.99999974E-6 : f32
    %366 = vector.broadcast %cst_102 : f32 to vector<8x1xf32>
    %367 = arith.addf %365, %366 : vector<8x1xf32>
    %368 = math.rsqrt %367 : vector<8x1xf32>
    %369 = vector.broadcast %368 : vector<8x1xf32> to vector<8x32xf32>
    %370 = arith.mulf %360, %369 : vector<8x32xf32>
    %371 = vector.broadcast %17 : vector<1x32xf32> to vector<8x32xf32>
    %372 = arith.mulf %370, %371 : vector<8x32xf32>
    %373 = vector.broadcast %18 : vector<1x32xf32> to vector<8x32xf32>
    %374 = arith.addf %372, %373 : vector<8x32xf32>
    %c0_103 = arith.constant 0 : index
    %c0_104 = arith.constant 0 : index
    %c0_105 = arith.constant 0 : index
    %375 = vector.load %arg11[%c0_103, %c0_104, %c0_105] : memref<1x8x32xf32, #tpu.memory_space<vmem>>, vector<1x8x32xf32>
    %376 = vector.shape_cast %375 : vector<1x8x32xf32> to vector<8x32xf32>
    %377 = vector.shape_cast %374 : vector<8x32xf32> to vector<1x8x32xf32>
    tpu.vector_store %arg11[%c0_103, %c0_104, %c0_105], %377 {strides = array<i32>} : memref<1x8x32xf32, #tpu.memory_space<vmem>>, vector<1x8x32xf32>,
    return
  }
  func.func @transform_0(%arg0: i32) -> (i32, i32, i32) {
    %c0_i32 = arith.constant 0 : i32
    %c0_i32_0 = arith.constant 0 : i32
    %c0_i32_1 = arith.constant 0 : i32
    return %arg0, %c0_i32, %c0_i32_0 : i32, i32, i32
  }
  func.func @transform_1(%arg0: i32) -> (i32, i32, i32) {
    %c0_i32 = arith.constant 0 : i32
    %c0_i32_0 = arith.constant 0 : i32
    %c0_i32_1 = arith.constant 0 : i32
    return %arg0, %c0_i32, %c0_i32_0 : i32, i32, i32
  }
  func.func @transform_2(%arg0: i32) -> (i32, i32, i32) {
    %c0_i32 = arith.constant 0 : i32
    %c0_i32_0 = arith.constant 0 : i32
    %c0_i32_1 = arith.constant 0 : i32
    return %arg0, %c0_i32, %c0_i32_0 : i32, i32, i32
  }
  func.func @transform_3(%arg0: i32) -> (i32, i32) {
    %c0_i32 = arith.constant 0 : i32
    %c0_i32_0 = arith.constant 0 : i32
    %c0_i32_1 = arith.constant 0 : i32
    return %c0_i32, %c0_i32_0 : i32, i32
  }
  func.func @transform_4(%arg0: i32) -> (i32, i32) {
    %c0_i32 = arith.constant 0 : i32
    %c0_i32_0 = arith.constant 0 : i32
    %c0_i32_1 = arith.constant 0 : i32
    return %c0_i32, %c0_i32_0 : i32, i32
  }
  func.func @transform_5(%arg0: i32) -> (i32, i32) {
    %c0_i32 = arith.constant 0 : i32
    %c0_i32_0 = arith.constant 0 : i32
    %c0_i32_1 = arith.constant 0 : i32
    return %c0_i32, %c0_i32_0 : i32, i32
  }
  func.func @transform_6(%arg0: i32) -> (i32, i32) {
    %c0_i32 = arith.constant 0 : i32
    %c0_i32_0 = arith.constant 0 : i32
    %c0_i32_1 = arith.constant 0 : i32
    return %c0_i32, %c0_i32_0 : i32, i32
  }
  func.func @transform_7(%arg0: i32) -> (i32, i32) {
    %c0_i32 = arith.constant 0 : i32
    %c0_i32_0 = arith.constant 0 : i32
    %c0_i32_1 = arith.constant 0 : i32
    return %c0_i32, %c0_i32_0 : i32, i32
  }
  func.func @transform_8(%arg0: i32) -> (i32, i32) {
    %c0_i32 = arith.constant 0 : i32
    %c0_i32_0 = arith.constant 0 : i32
    %c0_i32_1 = arith.constant 0 : i32
    return %c0_i32, %c0_i32_0 : i32, i32
  }
  func.func @transform_9(%arg0: i32) -> (i32, i32) {
    %c0_i32 = arith.constant 0 : i32
    %c0_i32_0 = arith.constant 0 : i32
    %c0_i32_1 = arith.constant 0 : i32
    return %c0_i32, %c0_i32_0 : i32, i32
  }
  func.func @transform_10(%arg0: i32) -> (i32, i32, i32) {
    %c0_i32 = arith.constant 0 : i32
    %c0_i32_0 = arith.constant 0 : i32
    %c0_i32_1 = arith.constant 0 : i32
    return %arg0, %c0_i32, %c0_i32_0 : i32, i32, i32
  }
}

</mosaic_0001>

<llo_original>
// kernel: gpt_decoder_forward.1
$region0: #{gpt_decoder_forward.1}
  #allocation0 [shape = 'u32[]', space=smem, size = 0x4, offset = 0x4, fixed_abs, tag = 'smem constant byte address 0x4 - core index']
  #allocation1 [shape = 'u32[144,128]{1,0:T(1,128)}', space=vmem, size = 0x12000, scoped, tag = 'internal scratch']
  %s0 = inlined_call_operand.vmem [shape: f32[2,8,32], index: 0, kind: input, shape index: {}]
  %s1 = inlined_call_operand.vmem [shape: f32[2,8,32], index: 1, kind: input, shape index: {}]
  %s2 = inlined_call_operand.vmem [shape: f32[2,8,8], index: 2, kind: input, shape index: {}]
  %s3 = inlined_call_operand.vmem [shape: bf16[32,96], index: 3, kind: input, shape index: {}]
  %s4 = inlined_call_operand.vmem [shape: f32[1,96], index: 4, kind: input, shape index: {}]
  %s5 = inlined_call_operand.vmem [shape: bf16[32,32], index: 5, kind: input, shape index: {}]
  %s6 = inlined_call_operand.vmem [shape: bf16[32,64], index: 6, kind: input, shape index: {}]
  %s7 = inlined_call_operand.vmem [shape: bf16[64,32], index: 7, kind: input, shape index: {}]
  %s8 = inlined_call_operand.vmem [shape: f32[8,32], index: 8, kind: input, shape index: {}]
  %s9 = inlined_call_operand.vmem [shape: f32[1,64], index: 9, kind: input, shape index: {}]
  %s10 = inlined_call_operand.hbm [shape: f32[2,8,32], index: 10, kind: output, shape index: {}]
  %s11 = sld [smem:[#allocation0]]
  $region73: #{gpt_decoder_forward.1} parent=0
    _
  %s13 = ssub.s32 1, %s11
  %s14 = scalar_select 0, %s13, %s11
  $region1: #{gpt_decoder_forward.1} parent=0
    #allocation2 [shape = 'u8[8192]{0}', space=vmem, size = 0x2000, scoped, tag = 'output window, operand 0']
    #allocation3 [shape = 's32[2]{0}', space=sflag, size = 0x8, scoped, tag = 'scoped memory for gpt_decoder_forward.1']
    %15 = vsyncpa [#allocation3], 0
    %s16 = scalar_lea.sflag [#allocation3], 1
    %17 = vsyncpa %s16, 0
    loop: start=0, step=1, limit=4
    $region2: #{gpt_decoder_forward.1} parent=1 // loop_pre_header
      _
    $region3: #{gpt_decoder_forward.1} parent=1 // loop_header
      %s19 = sphi 0, %s23
      %p20 = scmp.ge.s32.totalorder %s19, 4
      %s29 = sphi 0, %s31
      %s32 = sphi 0, %s29
      %s33 = sphi 0, %s32
      %s49 = sphi 0, %s33
      %s55 = sphi 0, %s57
      %s58 = sphi 0, %s55
      %s59 = sphi 0, %s58
      %s75 = sphi 0, %s59
      %s81 = sphi 0, %s83
      %s84 = sphi 0, %s81
      %s85 = sphi 0, %s84
      %s101 = sphi 0, %s85
      %s105 = sphi 0, %s105
      %s107 = sphi 0, %s105
      %s108 = sphi 0, %s107
      %s122 = sphi 0, %s108
      %s126 = sphi 0, %s126
      %s128 = sphi 0, %s126
      %s129 = sphi 0, %s128
      %s143 = sphi 0, %s129
      %s147 = sphi 0, %s147
      %s149 = sphi 0, %s147
      %s150 = sphi 0, %s149
      %s164 = sphi 0, %s150
      %s168 = sphi 0, %s168
      %s170 = sphi 0, %s168
      %s171 = sphi 0, %s170
      %s185 = sphi 0, %s171
      %s189 = sphi 0, %s189
      %s191 = sphi 0, %s189
      %s192 = sphi 0, %s191
      %s206 = sphi 0, %s192
      %s210 = sphi 0, %s210
      %s212 = sphi 0, %s210
      %s213 = sphi 0, %s212
      %s227 = sphi 0, %s213
      %s231 = sphi 0, %s231
      %s233 = sphi 0, %s231
      %s234 = sphi 0, %s233
      %s248 = sphi 0, %s234
      %s254 = sphi 0, %s256
      %s257 = sphi 0, %s254
      %s258 = sphi 0, %s257
      %s274 = sphi 0, %s258
    $region4: #{gpt_decoder_forward.1} parent=1 // loop_header_branch
      %22 = sbr.rel (%p20) target = $region8
    $region5: #{gpt_decoder_forward.1} parent=1 // loop_body
      %s24 = ssub.s32 %s19, 1
      %s25 = ssub.s32 %s19, 2
      %s26 = sadd.s32 %s19, 1
      %s27 = ssub.s32 %s19, %s26
      %p28 = scmp.eq.s32.totalorder %s27, 0
      %s30 = sadd.s32 %s29, 1
      %s31 = scalar_select %p28, %s29, %s30
      %p34 = pneg %p28
      %p35 = scmp.eq.s32.totalorder %s19, 1
      %p36 = por %p34, %p35
      %p37 = scmp.ne.s32.totalorder %s29, %s32
      %p38 = scmp.eq.s32.totalorder %s19, 0
      %p39 = por %p37, %p38
      %p40 = scmp.ne.s32.totalorder %s29, %s32
      %p41 = scmp.eq.s32.totalorder %s24, 1
      %p42 = por %p40, %p41
      %p43 = scmp.ne.s32.totalorder %s32, %s33
      %p44 = scmp.eq.s32.totalorder %s24, 0
      %p45 = por %p43, %p44
      %p46 = scmp.ne.s32.totalorder %s32, %s33
      %p47 = scmp.eq.s32.totalorder %s25, 1
      %p48 = por %p46, %p47
      %p50 = scmp.ne.s32.totalorder %s33, %s49
      %p51 = scmp.eq.s32.totalorder %s25, 0
      %p52 = por %p50, %p51
      %s53 = ssub.s32 %s19, %s26
      %p54 = scmp.eq.s32.totalorder %s53, 0
      %s56 = sadd.s32 %s55, 1
      %s57 = scalar_select %p54, %s55, %s56
      %p60 = pneg %p54
      %p61 = scmp.eq.s32.totalorder %s19, 1
      %p62 = por %p60, %p61
      %p63 = scmp.ne.s32.totalorder %s55, %s58
      %p64 = scmp.eq.s32.totalorder %s19, 0
      %p65 = por %p63, %p64
      %p66 = scmp.ne.s32.totalorder %s55, %s58
      %p67 = scmp.eq.s32.totalorder %s24, 1
      %p68 = por %p66, %p67
      %p69 = scmp.ne.s32.totalorder %s58, %s59
      %p70 = scmp.eq.s32.totalorder %s24, 0
      %p71 = por %p69, %p70
      %p72 = scmp.ne.s32.totalorder %s58, %s59
      %p73 = scmp.eq.s32.totalorder %s25, 1
      %p74 = por %p72, %p73
      %p76 = scmp.ne.s32.totalorder %s59, %s75
      %p77 = scmp.eq.s32.totalorder %s25, 0
      %p78 = por %p76, %p77
      %s79 = ssub.s32 %s19, %s26
      %p80 = scmp.eq.s32.totalorder %s79, 0
      %s82 = sadd.s32 %s81, 1
      %s83 = scalar_select %p80, %s81, %s82
      %p86 = pneg %p80
      %p87 = scmp.eq.s32.totalorder %s19, 1
      %p88 = por %p86, %p87
      %p89 = scmp.ne.s32.totalorder %s81, %s84
      %p90 = scmp.eq.s32.totalorder %s19, 0
      %p91 = por %p89, %p90
      %p92 = scmp.ne.s32.totalorder %s81, %s84
      %p93 = scmp.eq.s32.totalorder %s24, 1
      %p94 = por %p92, %p93
      %p95 = scmp.ne.s32.totalorder %s84, %s85
      %p96 = scmp.eq.s32.totalorder %s24, 0
      %p97 = por %p95, %p96
      %p98 = scmp.ne.s32.totalorder %s84, %s85
      %p99 = scmp.eq.s32.totalorder %s25, 1
      %p100 = por %p98, %p99
      %p102 = scmp.ne.s32.totalorder %s85, %s101
      %p103 = scmp.eq.s32.totalorder %s25, 0
      %p104 = por %p102, %p103
      %s106 = sadd.s32 %s105, 1
      %p109 = scmp.eq.s32.totalorder %s19, 1
      %p110 = scmp.ne.s32.totalorder %s105, %s107
      %p111 = scmp.eq.s32.totalorder %s19, 0
      %p112 = por %p110, %p111
      %p113 = scmp.ne.s32.totalorder %s105, %s107
      %p114 = scmp.eq.s32.totalorder %s24, 1
      %p115 = por %p113, %p114
      %p116 = scmp.ne.s32.totalorder %s107, %s108
      %p117 = scmp.eq.s32.totalorder %s24, 0
      %p118 = por %p116, %p117
      %p119 = scmp.ne.s32.totalorder %s107, %s108
      %p120 = scmp.eq.s32.totalorder %s25, 1
      %p121 = por %p119, %p120
      %p123 = scmp.ne.s32.totalorder %s108, %s122
      %p124 = scmp.eq.s32.totalorder %s25, 0
      %p125 = por %p123, %p124
      %s127 = sadd.s32 %s126, 1
      %p130 = scmp.eq.s32.totalorder %s19, 1
      %p131 = scmp.ne.s32.totalorder %s126, %s128
      %p132 = scmp.eq.s32.totalorder %s19, 0
      %p133 = por %p131, %p132
      %p134 = scmp.ne.s32.totalorder %s126, %s128
      %p135 = scmp.eq.s32.totalorder %s24, 1
      %p136 = por %p134, %p135
      %p137 = scmp.ne.s32.totalorder %s128, %s129
      %p138 = scmp.eq.s32.totalorder %s24, 0
      %p139 = por %p137, %p138
      %p140 = scmp.ne.s32.totalorder %s128, %s129
      %p141 = scmp.eq.s32.totalorder %s25, 1
      %p142 = por %p140, %p141
      %p144 = scmp.ne.s32.totalorder %s129, %s143
      %p145 = scmp.eq.s32.totalorder %s25, 0
      %p146 = por %p144, %p145
      %s148 = sadd.s32 %s147, 1
      %p151 = scmp.eq.s32.totalorder %s19, 1
      %p152 = scmp.ne.s32.totalorder %s147, %s149
      %p153 = scmp.eq.s32.totalorder %s19, 0
      %p154 = por %p152, %p153
      %p155 = scmp.ne.s32.totalorder %s147, %s149
      %p156 = scmp.eq.s32.totalorder %s24, 1
      %p157 = por %p155, %p156
      %p158 = scmp.ne.s32.totalorder %s149, %s150
      %p159 = scmp.eq.s32.totalorder %s24, 0
      %p160 = por %p158, %p159
      %p161 = scmp.ne.s32.totalorder %s149, %s150
      %p162 = scmp.eq.s32.totalorder %s25, 1
      %p163 = por %p161, %p162
      %p165 = scmp.ne.s32.totalorder %s150, %s164
      %p166 = scmp.eq.s32.totalorder %s25, 0
      %p167 = por %p165, %p166
      %s169 = sadd.s32 %s168, 1
      %p172 = scmp.eq.s32.totalorder %s19, 1
      %p173 = scmp.ne.s32.totalorder %s168, %s170
      %p174 = scmp.eq.s32.totalorder %s19, 0
      %p175 = por %p173, %p174
      %p176 = scmp.ne.s32.totalorder %s168, %s170
      %p177 = scmp.eq.s32.totalorder %s24, 1
      %p178 = por %p176, %p177
      %p179 = scmp.ne.s32.totalorder %s170, %s171
      %p180 = scmp.eq.s32.totalorder %s24, 0
      %p181 = por %p179, %p180
      %p182 = scmp.ne.s32.totalorder %s170, %s171
      %p183 = scmp.eq.s32.totalorder %s25, 1
      %p184 = por %p182, %p183
      %p186 = scmp.ne.s32.totalorder %s171, %s185
      %p187 = scmp.eq.s32.totalorder %s25, 0
      %p188 = por %p186, %p187
      %s190 = sadd.s32 %s189, 1
      %p193 = scmp.eq.s32.totalorder %s19, 1
      %p194 = scmp.ne.s32.totalorder %s189, %s191
      %p195 = scmp.eq.s32.totalorder %s19, 0
      %p196 = por %p194, %p195
      %p197 = scmp.ne.s32.totalorder %s189, %s191
      %p198 = scmp.eq.s32.totalorder %s24, 1
      %p199 = por %p197, %p198
      %p200 = scmp.ne.s32.totalorder %s191, %s192
      %p201 = scmp.eq.s32.totalorder %s24, 0
      %p202 = por %p200, %p201
      %p203 = scmp.ne.s32.totalorder %s191, %s192
      %p204 = scmp.eq.s32.totalorder %s25, 1
      %p205 = por %p203, %p204
      %p207 = scmp.ne.s32.totalorder %s192, %s206
      %p208 = scmp.eq.s32.totalorder %s25, 0
      %p209 = por %p207, %p208
      %s211 = sadd.s32 %s210, 1
      %p214 = scmp.eq.s32.totalorder %s19, 1
      %p215 = scmp.ne.s32.totalorder %s210, %s212
      %p216 = scmp.eq.s32.totalorder %s19, 0
      %p217 = por %p215, %p216
      %p218 = scmp.ne.s32.totalorder %s210, %s212
      %p219 = scmp.eq.s32.totalorder %s24, 1
      %p220 = por %p218, %p219
      %p221 = scmp.ne.s32.totalorder %s212, %s213
      %p222 = scmp.eq.s32.totalorder %s24, 0
      %p223 = por %p221, %p222
      %p224 = scmp.ne.s32.totalorder %s212, %s213
      %p225 = scmp.eq.s32.totalorder %s25, 1
      %p226 = por %p224, %p225
      %p228 = scmp.ne.s32.totalorder %s213, %s227
      %p229 = scmp.eq.s32.totalorder %s25, 0
      %p230 = por %p228, %p229
      %s232 = sadd.s32 %s231, 1
      %p235 = scmp.eq.s32.totalorder %s19, 1
      %p236 = scmp.ne.s32.totalorder %s231, %s233
      %p237 = scmp.eq.s32.totalorder %s19, 0
      %p238 = por %p236, %p237
      %p239 = scmp.ne.s32.totalorder %s231, %s233
      %p240 = scmp.eq.s32.totalorder %s24, 1
      %p241 = por %p239, %p240
      %p242 = scmp.ne.s32.totalorder %s233, %s234
      %p243 = scmp.eq.s32.totalorder %s24, 0
      %p244 = por %p242, %p243
      %p245 = scmp.ne.s32.totalorder %s233, %s234
      %p246 = scmp.eq.s32.totalorder %s25, 1
      %p247 = por %p245, %p246
      %p249 = scmp.ne.s32.totalorder %s234, %s248
      %p250 = scmp.eq.s32.totalorder %s25, 0
      %p251 = por %p249, %p250
      %s252 = ssub.s32 %s19, %s26
      %p253 = scmp.eq.s32.totalorder %s252, 0
      %s255 = sadd.s32 %s254, 1
      %s256 = scalar_select %p253, %s254, %s255
      %p259 = pneg %p253
      %p260 = scmp.eq.s32.totalorder %s19, 1
      %p261 = por %p259, %p260
      %p262 = scmp.ne.s32.totalorder %s254, %s257
      %p263 = scmp.eq.s32.totalorder %s19, 0
      %p264 = por %p262, %p263
      %p265 = scmp.ne.s32.totalorder %s254, %s257
      %p266 = scmp.eq.s32.totalorder %s24, 1
      %p267 = por %p265, %p266
      %p268 = scmp.ne.s32.totalorder %s257, %s258
      %p269 = scmp.eq.s32.totalorder %s24, 0
      %p270 = por %p268, %p269
      %p271 = scmp.ne.s32.totalorder %s257, %s258
      %p272 = scmp.eq.s32.totalorder %s25, 1
      %p273 = por %p271, %p272
      %p275 = scmp.ne.s32.totalorder %s258, %s274
      %p276 = scmp.eq.s32.totalorder %s25, 0
      %p277 = por %p275, %p276
      %p278 = scmp.le.s32.totalorder 1, %s19
      %p279 = scmp.lt.s32.totalorder %s19, 3
      %p280 = pnand %p278, %p279
      %p281 = pneg %p280
      // Predicated region
      $region9: #{gpt_decoder_forward.1} parent=5 // pred_check
        _
      $region10: #{gpt_decoder_forward.1} parent=5 // pred_check_branch
        %283 = sbr.rel (%p280) target = $region12
      $region11: #{gpt_decoder_forward.1} parent=5 // pred_region
        %s284 = ssub.s32 %s19, 1
        // Predicated region
        $region13: #{gpt_decoder_forward.1} parent=11 // pred_check
          %p285 = pneg %p118
        $region14: #{gpt_decoder_forward.1} parent=11 // pred_check_branch
          %287 = sbr.rel (%p285) target = $region16
        $region15: #{gpt_decoder_forward.1} parent=11 // pred_region
          _
        $region16: #{gpt_decoder_forward.1} parent=11 // pred_fallthru
          _
        // Predicated region
        $region17: #{gpt_decoder_forward.1} parent=11 // pred_check
          %p288 = pneg %p139
        $region18: #{gpt_decoder_forward.1} parent=11 // pred_check_branch
          %290 = sbr.rel (%p288) target = $region20
        $region19: #{gpt_decoder_forward.1} parent=11 // pred_region
          _
        $region20: #{gpt_decoder_forward.1} parent=11 // pred_fallthru
          _
        // Predicated region
        $region21: #{gpt_decoder_forward.1} parent=11 // pred_check
          %p291 = pneg %p160
        $region22: #{gpt_decoder_forward.1} parent=11 // pred_check_branch
          %293 = sbr.rel (%p291) target = $region24
        $region23: #{gpt_decoder_forward.1} parent=11 // pred_region
          _
        $region24: #{gpt_decoder_forward.1} parent=11 // pred_fallthru
          _
        // Predicated region
        $region25: #{gpt_decoder_forward.1} parent=11 // pred_check
          %p294 = pneg %p181
        $region26: #{gpt_decoder_forward.1} parent=11 // pred_check_branch
          %296 = sbr.rel (%p294) target = $region28
        $region27: #{gpt_decoder_forward.1} parent=11 // pred_region
          _
        $region28: #{gpt_decoder_forward.1} parent=11 // pred_fallthru
          _
        // Predicated region
        $region29: #{gpt_decoder_forward.1} parent=11 // pred_check
          %p297 = pneg %p202
        $region30: #{gpt_decoder_forward.1} parent=11 // pred_check_branch
          %299 = sbr.rel (%p297) target = $region32
        $region31: #{gpt_decoder_forward.1} parent=11 // pred_region
          _
        $region32: #{gpt_decoder_forward.1} parent=11 // pred_fallthru
          _
        // Predicated region
        $region33: #{gpt_decoder_forward.1} parent=11 // pred_check
          %p300 = pneg %p223
        $region34: #{gpt_decoder_forward.1} parent=11 // pred_check_branch
          %302 = sbr.rel (%p300) target = $region36
        $region35: #{gpt_decoder_forward.1} parent=11 // pred_region
          _
        $region36: #{gpt_decoder_forward.1} parent=11 // pred_fallthru
          _
        // Predicated region
        $region37: #{gpt_decoder_forward.1} parent=11 // pred_check
          %p303 = pneg %p244
        $region38: #{gpt_decoder_forward.1} parent=11 // pred_check_branch
          %305 = sbr.rel (%p303) target = $region40
        $region39: #{gpt_decoder_forward.1} parent=11 // pred_region
          _
        $region40: #{gpt_decoder_forward.1} parent=11 // pred_fallthru
          _
      $region12: #{gpt_decoder_forward.1} parent=5 // pred_fallthru
        _
      %p306 = scmp.lt.s32.totalorder %s19, 2
      // Predicated region
      $region41: #{gpt_decoder_forward.1} parent=5 // pred_check
        %p307 = pneg %p306
      $region42: #{gpt_decoder_forward.1} parent=5 // pred_check_branch
        %309 = sbr.rel (%p307) target = $region44
      $region43: #{gpt_decoder_forward.1} parent=5 // pred_region
        // Predicated region
        $region45: #{gpt_decoder_forward.1} parent=43 // pred_check
          %p310 = pneg %p39
        $region46: #{gpt_decoder_forward.1} parent=43 // pred_check_branch
          %312 = sbr.rel (%p310) target = $region48
        $region47: #{gpt_decoder_forward.1} parent=43 // pred_region
          %p313 = scmp.lt.s32.totalorder %s19, 1
          %s314 = scalar_select %p313, %s19, 1
          %s315 = smul.addr %s314, 8
          %s316 = scalar_lea.vmem %s0, %s315
        $region48: #{gpt_decoder_forward.1} parent=43 // pred_fallthru
          _
        // Predicated region
        $region49: #{gpt_decoder_forward.1} parent=43 // pred_check
          %p317 = pneg %p65
        $region50: #{gpt_decoder_forward.1} parent=43 // pred_check_branch
          %319 = sbr.rel (%p317) target = $region52
        $region51: #{gpt_decoder_forward.1} parent=43 // pred_region
          %p320 = scmp.lt.s32.totalorder %s19, 1
          %s321 = scalar_select %p320, %s19, 1
          %s322 = smul.addr %s321, 8
          %s323 = scalar_lea.vmem %s1, %s322
        $region52: #{gpt_decoder_forward.1} parent=43 // pred_fallthru
          _
        // Predicated region
        $region53: #{gpt_decoder_forward.1} parent=43 // pred_check
          %p324 = pneg %p91
        $region54: #{gpt_decoder_forward.1} parent=43 // pred_check_branch
          %326 = sbr.rel (%p324) target = $region56
        $region55: #{gpt_decoder_forward.1} parent=43 // pred_region
          %p327 = scmp.lt.s32.totalorder %s19, 1
          %s328 = scalar_select %p327, %s19, 1
          %s329 = smul.addr %s328, 8
          %s330 = scalar_lea.vmem %s2, %s329
        $region56: #{gpt_decoder_forward.1} parent=43 // pred_fallthru
          _
      $region44: #{gpt_decoder_forward.1} parent=5 // pred_fallthru
        _
      %p331 = scmp.le.s32.totalorder 1, %s19
      %p332 = scmp.lt.s32.totalorder %s19, 3
      %p333 = pnand %p331, %p332
      %p334 = pneg %p333
      // Predicated region
      $region57: #{gpt_decoder_forward.1} parent=5 // pred_check
        _
      $region58: #{gpt_decoder_forward.1} parent=5 // pred_check_branch
        %336 = sbr.rel (%p333) target = $region60
      $region59: #{gpt_decoder_forward.1} parent=5 // pred_region
        %s337 = ssub.s32 %s19, 1
        %p338 = scmp.lt.s32.totalorder %s24, 1
        %s339 = scalar_select %p338, %s24, 1
        %s340 = smul.addr %s339, 8
        %s341 = scalar_lea.vmem %s0, %s340
        %p342 = pneg %p45
        %p343 = pneg %p42
        %p344 = scmp.lt.s32.totalorder %s24, 1
        %s345 = scalar_select %p344, %s24, 1
        %s346 = smul.addr %s345, 8
        %s347 = scalar_lea.vmem %s1, %s346
        %p348 = pneg %p71
        %p349 = pneg %p68
        %p350 = scmp.lt.s32.totalorder %s24, 1
        %s351 = scalar_select %p350, %s24, 1
        %s352 = smul.addr %s351, 8
        %s353 = scalar_lea.vmem %s2, %s352
        %p354 = pneg %p97
        %p355 = pneg %p94
        %p356 = pneg %p118
        %p357 = pneg %p115
        %p358 = pneg %p139
        %p359 = pneg %p136
        %p360 = pneg %p160
        %p361 = pneg %p157
        %p362 = pneg %p181
        %p363 = pneg %p178
        %p364 = pneg %p202
        %p365 = pneg %p199
        %p366 = pneg %p223
        %p367 = pneg %p220
        %p368 = pneg %p244
        %p369 = pneg %p241
        %p370 = pneg %p270
        %p371 = pneg %p267
        %s372 = sand.u32 %s257, 1
        %s373 = scalar_lea.sflag [#allocation3], %s372
        %s374 = sand.u32 %s257, 1
        %s375 = smul.addr %s374, 8
        %s376 = scalar_lea.vmem [#allocation2], %s375
        %p377 = scmp.lt.s32.totalorder %s24, 1
        %s378 = scalar_select %p377, %s24, 1
        %s379 = smul.addr %s378, 8
        %s380 = scalar_lea.vmem %s0, %s379
        %p381 = scmp.lt.s32.totalorder %s24, 1
        %s382 = scalar_select %p381, %s24, 1
        %s383 = smul.addr %s382, 8
        %s384 = scalar_lea.vmem %s1, %s383
        %p385 = scmp.lt.s32.totalorder %s24, 1
        %s386 = scalar_select %p385, %s24, 1
        %s387 = smul.addr %s386, 8
        %s388 = scalar_lea.vmem %s2, %s387
        %v390 = vld [vmem:[%s380] sm:$0xff]
        %v391 = vld [vmem:[%s384] sm:$0xff]
        %v392 = vld [vmem:[%s388] sm:$0xff]
        %v393 = vld [vmem:[%s3] sm:$0xf]
        %v394 = vld [vmem:[%s3 + $0x4] sm:$0xf]
        %v395 = vld [vmem:[%s3 + $0x8] sm:$0xf]
        %v396 = vld [vmem:[%s3 + $0xc] sm:$0xf]
        %v397 = vld [vmem:[%s4] sm:$0x1]
        %v398 = vld [vmem:[%s5] sm:$0xf]
        %v399 = vld [vmem:[%s5 + $0x4] sm:$0xf]
        %v400 = vld [vmem:[%s5 + $0x8] sm:$0xf]
        %v401 = vld [vmem:[%s5 + $0xc] sm:$0xf]
        %v402 = vld [vmem:[%s6] sm:$0xf]
        %v403 = vld [vmem:[%s6 + $0x4] sm:$0xf]
        %v404 = vld [vmem:[%s6 + $0x8] sm:$0xf]
        %v405 = vld [vmem:[%s6 + $0xc] sm:$0xf]
        %v406 = vld [vmem:[%s7] sm:$0xf]
        %v407 = vld [vmem:[%s7 + $0x4] sm:$0xf]
        %v408 = vld [vmem:[%s7 + $0x8] sm:$0xf]
        %v409 = vld [vmem:[%s7 + $0xc] sm:$0xf]
        %v410 = vld [vmem:[%s7 + $0x10] sm:$0xf]
        %v411 = vld [vmem:[%s7 + $0x14] sm:$0xf]
        %v412 = vld [vmem:[%s7 + $0x18] sm:$0xf]
        %v413 = vld [vmem:[%s7 + $0x1c] sm:$0xf]
        %v414 = vld [vmem:[%s8] sm:$0xff]
        %v415 = vld [vmem:[%s9] sm:$0x1]
        %v416 = vpack.c.bf16 %v391, %v391
        %v421 = vunpack.c.l.b16 %v393
        %v422 = vunpack.c.l.b16 %v394
        %v423 = vunpack.c.l.b16 %v395
        %v424 = vunpack.c.l.b16 %v396
        %v425 = vpack.c.b16 %v422, %v421
        %v426 = vpack.c.b16 %v424, %v423
        %vm429 = vcmask 261120
        %v431 = vsel %vm429, %v416, 0
        %433 = vmatprep.subr.bf16.mxu0 0
        %434 = vmatpush1.bf16.msra.mxu0 %v425
        %435 = vmatprep.subr.bf16.mxu0 0
        %436 = vmatpush1.bf16.msra.mxu0 %v426
        %437 = vmatprep.subr.bf16.mxu0 0
        %438 = vmatpush1.bf16.msra.mxu0 0
        %439 = vmatprep.subr.bf16.mxu0 0
        %440 = vmatpush1.bf16.msra.mxu0 0
        %441 = vmatprep.subr.bf16.mxu0 0
        %442 = vmatpush1.bf16.msra.mxu0 0
        %443 = vmatprep.subr.bf16.mxu0 0
        %444 = vmatpush1.bf16.msra.mxu0 0
        %445 = vmatprep.subr.bf16.mxu0 0
        %446 = vmatpush1.bf16.msra.mxu0 0
        %447 = vmatprep.subr.bf16.mxu0 0
        %448 = vmatpush1.bf16.msra.mxu0 0
        %449 = vmatprep.subr.bf16.mxu0 0
        %450 = vmatpush1.bf16.msra.mxu0 0
        %451 = vmatprep.subr.bf16.mxu0 0
        %452 = vmatpush1.bf16.msra.mxu0 0
        %453 = vmatprep.subr.bf16.mxu0 0
        %454 = vmatpush1.bf16.msra.mxu0 0
        %455 = vmatprep.subr.bf16.mxu0 0
        %456 = vmatpush1.bf16.msra.mxu0 0
        %457 = vmatprep.subr.bf16.mxu0 0
        %458 = vmatpush1.bf16.msra.mxu0 0
        %459 = vmatprep.subr.bf16.mxu0 0
        %460 = vmatpush1.bf16.msra.mxu0 0
        %461 = vmatprep.subr.bf16.mxu0 0
        %462 = vmatpush1.bf16.msra.mxu0 0
        %463 = vmatprep.subr.bf16.mxu0 0
        %464 = vmatpush1.bf16.msra.mxu0 0
        %465 = vmatprep.mubr.bf16.mxu0 0
        %466 = vmatmul.mubr.bf16.gmra.mrb[0].mxu0 %v431
        %v467 = vpop.f32.mrb[0].mxu0
        %v468 = vadd.f32 0.0, %v467
        %v469 = vpop.f32.mrb[0].mxu0
        %v470 = vpop.f32.mrb[0].mxu0
        %v471 = vpop.f32.mrb[0].mxu0
        %472 = vdwg.mxu0
        %v473 = vsel %vm429, %v390, 0.0
        %474 = vadd.xlane.f32.xlu0 %v473
        %v475 = vpop.xlane.xlu0 %474
        %v476 = vrcp.pop 32.0
        %v477 = vmul.f32 %v475, %v476
        %v478 = vsub.f32 %v390, %v477
        %v479 = vmul.f32 %v478, %v478
        %v480 = vsel %vm429, %v479, 0.0
        %481 = vadd.xlane.f32.xlu0 %v480
        %v482 = vpop.xlane.xlu0 %481
        %v483 = vmul.f32 %v482, %v476
        %v484 = vadd.f32 %v483, 1e-05
        %v485 = vrsqrt.pop %v484
        %v486 = vmul.f32 %v478, %v485
        %v487 = vlaneseq
        %v488 = vshrl.u32 %v487, 7
        %v489 = vsub.s32 0, %v488
        %v490 = vrot.slane %v414, %v489
        %v491 = vmul.f32 %v486, %v490
        %v492 = vlaneseq
        %v493 = vshrl.u32 %v492, 7
        %v494 = vsub.s32 1, %v493
        %v495 = vrot.slane %v414, %v494
        %v496 = vadd.f32 %v491, %v495
        %v497 = vpack.c.bf16 %v496, %v496
        %v499 = vlaneseq
        %v500 = vshrl.u32 %v499, 7
        %v501 = vsub.s32 0, %v500
        %v502 = vrot.slane %v397, %v501
        %v505 = vsel %vm429, %v497, 0
        %507 = vmatprep.subr.bf16.mxu0 0
        %508 = vmatpush1.bf16.msra.mxu0 %v425
        %509 = vmatprep.subr.bf16.mxu0 0
        %510 = vmatpush1.bf16.msra.mxu0 %v426
        %511 = vmatprep.subr.bf16.mxu0 0
        %512 = vmatpush1.bf16.msra.mxu0 0
        %513 = vmatprep.subr.bf16.mxu0 0
        %514 = vmatpush1.bf16.msra.mxu0 0
        %515 = vmatprep.subr.bf16.mxu0 0
        %516 = vmatpush1.bf16.msra.mxu0 0
        %517 = vmatprep.subr.bf16.mxu0 0
        %518 = vmatpush1.bf16.msra.mxu0 0
        %519 = vmatprep.subr.bf16.mxu0 0
        %520 = vmatpush1.bf16.msra.mxu0 0
        %521 = vmatprep.subr.bf16.mxu0 0
        %522 = vmatpush1.bf16.msra.mxu0 0
        %523 = vmatprep.subr.bf16.mxu0 0
        %524 = vmatpush1.bf16.msra.mxu0 0
        %525 = vmatprep.subr.bf16.mxu0 0
        %526 = vmatpush1.bf16.msra.mxu0 0
        %527 = vmatprep.subr.bf16.mxu0 0
        %528 = vmatpush1.bf16.msra.mxu0 0
        %529 = vmatprep.subr.bf16.mxu0 0
        %530 = vmatpush1.bf16.msra.mxu0 0
        %531 = vmatprep.subr.bf16.mxu0 0
        %532 = vmatpush1.bf16.msra.mxu0 0
        %533 = vmatprep.subr.bf16.mxu0 0
        %534 = vmatpush1.bf16.msra.mxu0 0
        %535 = vmatprep.subr.bf16.mxu0 0
        %536 = vmatpush1.bf16.msra.mxu0 0
        %537 = vmatprep.subr.bf16.mxu0 0
        %538 = vmatpush1.bf16.msra.mxu0 0
        %539 = vmatprep.mubr.bf16.mxu0 0
        %540 = vmatmul.mubr.bf16.gmra.mrb[0].mxu0 %v505
        %v541 = vpop.f32.mrb[0].mxu0
        %v542 = vadd.f32 %v502, %v541
        %v543 = vpop.f32.mrb[0].mxu0
        %v544 = vpop.f32.mrb[0].mxu0
        %v545 = vpop.f32.mrb[0].mxu0
        %546 = vdwg.mxu0
        %v547 = vadd.f32 %v542, %v468
        %v548 = vpack.c.bf16 %v547, %v547
        %v549 = vpack.c.bf16 %v542, %v542
        %551 = vrot.lane.b32.xlu0 %v548, 96
        %v552 = vpop.permute.xlu0 %551
        %vm553 = vcmask 64512
        %v555 = vsel %vm553, %v548, 0
        %v558 = vsel %vm553, %v552, 0
        %560 = vmatprep.subr.bf16.mxu0 0
        %561 = vmatpush1.bf16.xpose.msra.mxu0 %v558
        %562 = vmatprep.subr.bf16.mxu0 0
        %563 = vmatpush1.bf16.xpose.msra.mxu0 0
        %564 = vmatprep.subr.bf16.mxu0 0
        %565 = vmatpush1.bf16.xpose.msra.mxu0 0
        %566 = vmatprep.subr.bf16.mxu0 0
        %567 = vmatpush1.bf16.xpose.msra.mxu0 0
        %568 = vmatprep.subr.bf16.mxu0 0
        %569 = vmatpush1.bf16.xpose.msra.mxu0 0
        %570 = vmatprep.subr.bf16.mxu0 0
        %571 = vmatpush1.bf16.xpose.msra.mxu0 0
        %572 = vmatprep.subr.bf16.mxu0 0
        %573 = vmatpush1.bf16.xpose.msra.mxu0 0
        %574 = vmatprep.subr.bf16.mxu0 0
        %575 = vmatpush1.bf16.xpose.msra.mxu0 0
        %576 = vmatprep.subr.bf16.mxu0 0
        %577 = vmatpush1.bf16.xpose.msra.mxu0 0
        %578 = vmatprep.subr.bf16.mxu0 0
        %579 = vmatpush1.bf16.xpose.msra.mxu0 0
        %580 = vmatprep.subr.bf16.mxu0 0
        %581 = vmatpush1.bf16.xpose.msra.mxu0 0
        %582 = vmatprep.subr.bf16.mxu0 0
        %583 = vmatpush1.bf16.xpose.msra.mxu0 0
        %584 = vmatprep.subr.bf16.mxu0 0
        %585 = vmatpush1.bf16.xpose.msra.mxu0 0
        %586 = vmatprep.subr.bf16.mxu0 0
        %587 = vmatpush1.bf16.xpose.msra.mxu0 0
        %588 = vmatprep.subr.bf16.mxu0 0
        %589 = vmatpush1.bf16.xpose.msra.mxu0 0
        %590 = vmatprep.subr.bf16.mxu0 0
        %591 = vmatpush1.bf16.xpose.msra.mxu0 0
        %592 = vmatprep.mubr.bf16.mxu0 0
        %593 = vmatmul.mubr.bf16.gmra.mrb[0].mxu0 %v555
        %v594 = vpop.f32.mrb[0].mxu0
        %v595 = vadd.f32 0.0, %v594
        %v596 = vpop.f32.mrb[0].mxu0
        %v597 = vpop.f32.mrb[0].mxu0
        %v598 = vpop.f32.mrb[0].mxu0
        %599 = vdwg.mxu0
        %v600 = vmul.f32 %v595, 0.35355338
        %v601 = vadd.f32 %v600, %v392
        %v602 = vsel %vm553, %v601, -inf
        %603 = vmax.xlane.f32.xlu0 %v602
        %v604 = vpop.xlane.xlu0 %603
        %v605 = vsub.f32 %v601, %v604
        %v606 = vmul.f32 %v605, 1.442695
        %v607 = vpow.pop %v606
        %v608 = vsel %vm553, %v607, 0.0
        %609 = vadd.xlane.f32.xlu0 %v608
        %v610 = vpop.xlane.xlu0 %609
        %v611 = vrcp.pop %v610
        %v612 = vmul.f32 %v607, %v611
        %v613 = vpack.c.bf16 %v612, %v612
        %615 = vrot.lane.b32.xlu0 %v549, 64
        %v616 = vpop.permute.xlu0 %615
        %v618 = vsel %vm553, %v613, 0
        %vm620 = vcmask 1043456
        %v622 = vsel %vm620, %v616, 0
        %624 = vmatprep.subr.bf16.mxu0 0
        %625 = vmatpush1.bf16.msra.mxu0 %v622
        %626 = vmatprep.subr.bf16.mxu0 0
        %627 = vmatpush1.bf16.msra.mxu0 0
        %628 = vmatprep.subr.bf16.mxu0 0
        %629 = vmatpush1.bf16.msra.mxu0 0
        %630 = vmatprep.subr.bf16.mxu0 0
        %631 = vmatpush1.bf16.msra.mxu0 0
        %632 = vmatprep.subr.bf16.mxu0 0
        %633 = vmatpush1.bf16.msra.mxu0 0
        %634 = vmatprep.subr.bf16.mxu0 0
        %635 = vmatpush1.bf16.msra.mxu0 0
        %636 = vmatprep.subr.bf16.mxu0 0
        %637 = vmatpush1.bf16.msra.mxu0 0
        %638 = vmatprep.subr.bf16.mxu0 0
        %639 = vmatpush1.bf16.msra.mxu0 0
        %640 = vmatprep.subr.bf16.mxu0 0
        %641 = vmatpush1.bf16.msra.mxu0 0
        %642 = vmatprep.subr.bf16.mxu0 0
        %643 = vmatpush1.bf16.msra.mxu0 0
        %644 = vmatprep.subr.bf16.mxu0 0
        %645 = vmatpush1.bf16.msra.mxu0 0
        %646 = vmatprep.subr.bf16.mxu0 0
        %647 = vmatpush1.bf16.msra.mxu0 0
        %648 = vmatprep.subr.bf16.mxu0 0
        %649 = vmatpush1.bf16.msra.mxu0 0
        %650 = vmatprep.subr.bf16.mxu0 0
        %651 = vmatpush1.bf16.msra.mxu0 0
        %652 = vmatprep.subr.bf16.mxu0 0
        %653 = vmatpush1.bf16.msra.mxu0 0
        %654 = vmatprep.subr.bf16.mxu0 0
        %655 = vmatpush1.bf16.msra.mxu0 0
        %656 = vmatprep.mubr.bf16.mxu0 0
        %657 = vmatmul.mubr.bf16.gmra.mrb[0].mxu0 %v618
        %v658 = vpop.f32.mrb[0].mxu0
        %v659 = vadd.f32 0.0, %v658
        %v660 = vpop.f32.mrb[0].mxu0
        %v661 = vpop.f32.mrb[0].mxu0
        %v662 = vpop.f32.mrb[0].mxu0
        %663 = vdwg.mxu0
        %664 = vrot.lane.b32.xlu0 %v548, 120
        %v665 = vpop.permute.xlu0 %664
        %666 = vrot.lane.b32.xlu0 %v548, 88
        %v667 = vpop.permute.xlu0 %666
        %v669 = vsel %vm553, %v665, 0
        %v672 = vsel %vm553, %v667, 0
        %674 = vmatprep.subr.bf16.mxu0 0
        %675 = vmatpush1.bf16.xpose.msra.mxu0 %v672
        %676 = vmatprep.subr.bf16.mxu0 0
        %677 = vmatpush1.bf16.xpose.msra.mxu0 0
        %678 = vmatprep.subr.bf16.mxu0 0
        %679 = vmatpush1.bf16.xpose.msra.mxu0 0
        %680 = vmatprep.subr.bf16.mxu0 0
        %681 = vmatpush1.bf16.xpose.msra.mxu0 0
        %682 = vmatprep.subr.bf16.mxu0 0
        %683 = vmatpush1.bf16.xpose.msra.mxu0 0
        %684 = vmatprep.subr.bf16.mxu0 0
        %685 = vmatpush1.bf16.xpose.msra.mxu0 0
        %686 = vmatprep.subr.bf16.mxu0 0
        %687 = vmatpush1.bf16.xpose.msra.mxu0 0
        %688 = vmatprep.subr.bf16.mxu0 0
        %689 = vmatpush1.bf16.xpose.msra.mxu0 0
        %690 = vmatprep.subr.bf16.mxu0 0
        %691 = vmatpush1.bf16.xpose.msra.mxu0 0
        %692 = vmatprep.subr.bf16.mxu0 0
        %693 = vmatpush1.bf16.xpose.msra.mxu0 0
        %694 = vmatprep.subr.bf16.mxu0 0
        %695 = vmatpush1.bf16.xpose.msra.mxu0 0
        %696 = vmatprep.subr.bf16.mxu0 0
        %697 = vmatpush1.bf16.xpose.msra.mxu0 0
        %698 = vmatprep.subr.bf16.mxu0 0
        %699 = vmatpush1.bf16.xpose.msra.mxu0 0
        %700 = vmatprep.subr.bf16.mxu0 0
        %701 = vmatpush1.bf16.xpose.msra.mxu0 0
        %702 = vmatprep.subr.bf16.mxu0 0
        %703 = vmatpush1.bf16.xpose.msra.mxu0 0
        %704 = vmatprep.subr.bf16.mxu0 0
        %705 = vmatpush1.bf16.xpose.msra.mxu0 0
        %706 = vmatprep.mubr.bf16.mxu0 0
        %707 = vmatmul.mubr.bf16.gmra.mrb[0].mxu0 %v669
        %v708 = vpop.f32.mrb[0].mxu0
        %v709 = vadd.f32 0.0, %v708
        %v710 = vpop.f32.mrb[0].mxu0
        %v711 = vpop.f32.mrb[0].mxu0
        %v712 = vpop.f32.mrb[0].mxu0
        %713 = vdwg.mxu0
        %v714 = vmul.f32 %v709, 0.35355338
        %v715 = vadd.f32 %v714, %v392
        %v716 = vsel %vm553, %v715, -inf
        %717 = vmax.xlane.f32.xlu0 %v716
        %v718 = vpop.xlane.xlu0 %717
        %v719 = vsub.f32 %v715, %v718
        %v720 = vmul.f32 %v719, 1.442695
        %v721 = vpow.pop %v720
        %v722 = vsel %vm553, %v721, 0.0
        %723 = vadd.xlane.f32.xlu0 %v722
        %v724 = vpop.xlane.xlu0 %723
        %v725 = vrcp.pop %v724
        %v726 = vmul.f32 %v721, %v725
        %v727 = vpack.c.bf16 %v726, %v726
        %728 = vrot.lane.b32.xlu0 %v549, 56
        %v729 = vpop.permute.xlu0 %728
        %v731 = vsel %vm553, %v727, 0
        %v734 = vsel %vm620, %v729, 0
        %736 = vmatprep.subr.bf16.mxu0 0
        %737 = vmatpush1.bf16.msra.mxu0 %v734
        %738 = vmatprep.subr.bf16.mxu0 0
        %739 = vmatpush1.bf16.msra.mxu0 0
        %740 = vmatprep.subr.bf16.mxu0 0
        %741 = vmatpush1.bf16.msra.mxu0 0
        %742 = vmatprep.subr.bf16.mxu0 0
        %743 = vmatpush1.bf16.msra.mxu0 0
        %744 = vmatprep.subr.bf16.mxu0 0
        %745 = vmatpush1.bf16.msra.mxu0 0
        %746 = vmatprep.subr.bf16.mxu0 0
        %747 = vmatpush1.bf16.msra.mxu0 0
        %748 = vmatprep.subr.bf16.mxu0 0
        %749 = vmatpush1.bf16.msra.mxu0 0
        %750 = vmatprep.subr.bf16.mxu0 0
        %751 = vmatpush1.bf16.msra.mxu0 0
        %752 = vmatprep.subr.bf16.mxu0 0
        %753 = vmatpush1.bf16.msra.mxu0 0
        %754 = vmatprep.subr.bf16.mxu0 0
        %755 = vmatpush1.bf16.msra.mxu0 0
        %756 = vmatprep.subr.bf16.mxu0 0
        %757 = vmatpush1.bf16.msra.mxu0 0
        %758 = vmatprep.subr.bf16.mxu0 0
        %759 = vmatpush1.bf16.msra.mxu0 0
        %760 = vmatprep.subr.bf16.mxu0 0
        %761 = vmatpush1.bf16.msra.mxu0 0
        %762 = vmatprep.subr.bf16.mxu0 0
        %763 = vmatpush1.bf16.msra.mxu0 0
        %764 = vmatprep.subr.bf16.mxu0 0
        %765 = vmatpush1.bf16.msra.mxu0 0
        %766 = vmatprep.subr.bf16.mxu0 0
        %767 = vmatpush1.bf16.msra.mxu0 0
        %768 = vmatprep.mubr.bf16.mxu0 0
        %769 = vmatmul.mubr.bf16.gmra.mrb[0].mxu0 %v731
        %v770 = vpop.f32.mrb[0].mxu0
        %v771 = vadd.f32 0.0, %v770
        %v772 = vpop.f32.mrb[0].mxu0
        %v773 = vpop.f32.mrb[0].mxu0
        %v774 = vpop.f32.mrb[0].mxu0
        %775 = vdwg.mxu0
        %776 = vrot.lane.b32.xlu0 %v548, 112
        %v777 = vpop.permute.xlu0 %776
        %778 = vrot.lane.b32.xlu0 %v548, 80
        %v779 = vpop.permute.xlu0 %778
        %v781 = vsel %vm553, %v777, 0
        %v784 = vsel %vm553, %v779, 0
        %786 = vmatprep.subr.bf16.mxu0 0
        %787 = vmatpush1.bf16.xpose.msra.mxu0 %v784
        %788 = vmatprep.subr.bf16.mxu0 0
        %789 = vmatpush1.bf16.xpose.msra.mxu0 0
        %790 = vmatprep.subr.bf16.mxu0 0
        %791 = vmatpush1.bf16.xpose.msra.mxu0 0
        %792 = vmatprep.subr.bf16.mxu0 0
        %793 = vmatpush1.bf16.xpose.msra.mxu0 0
        %794 = vmatprep.subr.bf16.mxu0 0
        %795 = vmatpush1.bf16.xpose.msra.mxu0 0
        %796 = vmatprep.subr.bf16.mxu0 0
        %797 = vmatpush1.bf16.xpose.msra.mxu0 0
        %798 = vmatprep.subr.bf16.mxu0 0
        %799 = vmatpush1.bf16.xpose.msra.mxu0 0
        %800 = vmatprep.subr.bf16.mxu0 0
        %801 = vmatpush1.bf16.xpose.msra.mxu0 0
        %802 = vmatprep.subr.bf16.mxu0 0
        %803 = vmatpush1.bf16.xpose.msra.mxu0 0
        %804 = vmatprep.subr.bf16.mxu0 0
        %805 = vmatpush1.bf16.xpose.msra.mxu0 0
        %806 = vmatprep.subr.bf16.mxu0 0
        %807 = vmatpush1.bf16.xpose.msra.mxu0 0
        %808 = vmatprep.subr.bf16.mxu0 0
        %809 = vmatpush1.bf16.xpose.msra.mxu0 0
        %810 = vmatprep.subr.bf16.mxu0 0
        %811 = vmatpush1.bf16.xpose.msra.mxu0 0
        %812 = vmatprep.subr.bf16.mxu0 0
        %813 = vmatpush1.bf16.xpose.msra.mxu0 0
        %814 = vmatprep.subr.bf16.mxu0 0
        %815 = vmatpush1.bf16.xpose.msra.mxu0 0
        %816 = vmatprep.subr.bf16.mxu0 0
        %817 = vmatpush1.bf16.xpose.msra.mxu0 0
        %818 = vmatprep.mubr.bf16.mxu0 0
        %819 = vmatmul.mubr.bf16.gmra.mrb[0].mxu0 %v781
        %v820 = vpop.f32.mrb[0].mxu0
        %v821 = vadd.f32 0.0, %v820
        %v822 = vpop.f32.mrb[0].mxu0
        %v823 = vpop.f32.mrb[0].mxu0
        %v824 = vpop.f32.mrb[0].mxu0
        %825 = vdwg.mxu0
        %v826 = vmul.f32 %v821, 0.35355338
        %v827 = vadd.f32 %v826, %v392
        %v828 = vsel %vm553, %v827, -inf
        %829 = vmax.xlane.f32.xlu0 %v828
        %v830 = vpop.xlane.xlu0 %829
        %v831 = vsub.f32 %v827, %v830
        %v832 = vmul.f32 %v831, 1.442695
        %v833 = vpow.pop %v832
        %v834 = vsel %vm553, %v833, 0.0
        %835 = vadd.xlane.f32.xlu0 %v834
        %v836 = vpop.xlane.xlu0 %835
        %v837 = vrcp.pop %v836
        %v838 = vmul.f32 %v833, %v837
        %v839 = vpack.c.bf16 %v838, %v838
        %840 = vrot.lane.b32.xlu0 %v549, 48
        %v841 = vpop.permute.xlu0 %840
        %v843 = vsel %vm553, %v839, 0
        %v846 = vsel %vm620, %v841, 0
        %848 = vmatprep.subr.bf16.mxu0 0
        %849 = vmatpush1.bf16.msra.mxu0 %v846
        %850 = vmatprep.subr.bf16.mxu0 0
        %851 = vmatpush1.bf16.msra.mxu0 0
        %852 = vmatprep.subr.bf16.mxu0 0
        %853 = vmatpush1.bf16.msra.mxu0 0
        %854 = vmatprep.subr.bf16.mxu0 0
        %855 = vmatpush1.bf16.msra.mxu0 0
        %856 = vmatprep.subr.bf16.mxu0 0
        %857 = vmatpush1.bf16.msra.mxu0 0
        %858 = vmatprep.subr.bf16.mxu0 0
        %859 = vmatpush1.bf16.msra.mxu0 0
        %860 = vmatprep.subr.bf16.mxu0 0
        %861 = vmatpush1.bf16.msra.mxu0 0
        %862 = vmatprep.subr.bf16.mxu0 0
        %863 = vmatpush1.bf16.msra.mxu0 0
        %864 = vmatprep.subr.bf16.mxu0 0
        %865 = vmatpush1.bf16.msra.mxu0 0
        %866 = vmatprep.subr.bf16.mxu0 0
        %867 = vmatpush1.bf16.msra.mxu0 0
        %868 = vmatprep.subr.bf16.mxu0 0
        %869 = vmatpush1.bf16.msra.mxu0 0
        %870 = vmatprep.subr.bf16.mxu0 0
        %871 = vmatpush1.bf16.msra.mxu0 0
        %872 = vmatprep.subr.bf16.mxu0 0
        %873 = vmatpush1.bf16.msra.mxu0 0
        %874 = vmatprep.subr.bf16.mxu0 0
        %875 = vmatpush1.bf16.msra.mxu0 0
        %876 = vmatprep.subr.bf16.mxu0 0
        %877 = vmatpush1.bf16.msra.mxu0 0
        %878 = vmatprep.subr.bf16.mxu0 0
        %879 = vmatpush1.bf16.msra.mxu0 0
        %880 = vmatprep.mubr.bf16.mxu0 0
        %881 = vmatmul.mubr.bf16.gmra.mrb[0].mxu0 %v843
        %v882 = vpop.f32.mrb[0].mxu0
        %v883 = vadd.f32 0.0, %v882
        %v884 = vpop.f32.mrb[0].mxu0
        %v885 = vpop.f32.mrb[0].mxu0
        %v886 = vpop.f32.mrb[0].mxu0
        %887 = vdwg.mxu0
        %888 = vrot.lane.b32.xlu0 %v548, 104
        %v889 = vpop.permute.xlu0 %888
        %890 = vrot.lane.b32.xlu0 %v548, 72
        %v891 = vpop.permute.xlu0 %890
        %v893 = vsel %vm553, %v889, 0
        %v896 = vsel %vm553, %v891, 0
        %898 = vmatprep.subr.bf16.mxu0 0
        %899 = vmatpush1.bf16.xpose.msra.mxu0 %v896
        %900 = vmatprep.subr.bf16.mxu0 0
        %901 = vmatpush1.bf16.xpose.msra.mxu0 0
        %902 = vmatprep.subr.bf16.mxu0 0
        %903 = vmatpush1.bf16.xpose.msra.mxu0 0
        %904 = vmatprep.subr.bf16.mxu0 0
        %905 = vmatpush1.bf16.xpose.msra.mxu0 0
        %906 = vmatprep.subr.bf16.mxu0 0
        %907 = vmatpush1.bf16.xpose.msra.mxu0 0
        %908 = vmatprep.subr.bf16.mxu0 0
        %909 = vmatpush1.bf16.xpose.msra.mxu0 0
        %910 = vmatprep.subr.bf16.mxu0 0
        %911 = vmatpush1.bf16.xpose.msra.mxu0 0
        %912 = vmatprep.subr.bf16.mxu0 0
        %913 = vmatpush1.bf16.xpose.msra.mxu0 0
        %914 = vmatprep.subr.bf16.mxu0 0
        %915 = vmatpush1.bf16.xpose.msra.mxu0 0
        %916 = vmatprep.subr.bf16.mxu0 0
        %917 = vmatpush1.bf16.xpose.msra.mxu0 0
        %918 = vmatprep.subr.bf16.mxu0 0
        %919 = vmatpush1.bf16.xpose.msra.mxu0 0
        %920 = vmatprep.subr.bf16.mxu0 0
        %921 = vmatpush1.bf16.xpose.msra.mxu0 0
        %922 = vmatprep.subr.bf16.mxu0 0
        %923 = vmatpush1.bf16.xpose.msra.mxu0 0
        %924 = vmatprep.subr.bf16.mxu0 0
        %925 = vmatpush1.bf16.xpose.msra.mxu0 0
        %926 = vmatprep.subr.bf16.mxu0 0
        %927 = vmatpush1.bf16.xpose.msra.mxu0 0
        %928 = vmatprep.subr.bf16.mxu0 0
        %929 = vmatpush1.bf16.xpose.msra.mxu0 0
        %930 = vmatprep.mubr.bf16.mxu0 0
        %931 = vmatmul.mubr.bf16.gmra.mrb[0].mxu0 %v893
        %v932 = vpop.f32.mrb[0].mxu0
        %v933 = vadd.f32 0.0, %v932
        %v934 = vpop.f32.mrb[0].mxu0
        %v935 = vpop.f32.mrb[0].mxu0
        %v936 = vpop.f32.mrb[0].mxu0
        %937 = vdwg.mxu0
        %v938 = vmul.f32 %v933, 0.35355338
        %v939 = vadd.f32 %v938, %v392
        %v940 = vsel %vm553, %v939, -inf
        %941 = vmax.xlane.f32.xlu0 %v940
        %v942 = vpop.xlane.xlu0 %941
        %v943 = vsub.f32 %v939, %v942
        %v944 = vmul.f32 %v943, 1.442695
        %v945 = vpow.pop %v944
        %v946 = vsel %vm553, %v945, 0.0
        %947 = vadd.xlane.f32.xlu0 %v946
        %v948 = vpop.xlane.xlu0 %947
        %v949 = vrcp.pop %v948
        %v950 = vmul.f32 %v945, %v949
        %v951 = vpack.c.bf16 %v950, %v950
        %952 = vrot.lane.b32.xlu0 %v549, 40
        %v953 = vpop.permute.xlu0 %952
        %v955 = vsel %vm553, %v951, 0
        %v958 = vsel %vm620, %v953, 0
        %960 = vmatprep.subr.bf16.mxu0 0
        %961 = vmatpush1.bf16.msra.mxu0 %v958
        %962 = vmatprep.subr.bf16.mxu0 0
        %963 = vmatpush1.bf16.msra.mxu0 0
        %964 = vmatprep.subr.bf16.mxu0 0
        %965 = vmatpush1.bf16.msra.mxu0 0
        %966 = vmatprep.subr.bf16.mxu0 0
        %967 = vmatpush1.bf16.msra.mxu0 0
        %968 = vmatprep.subr.bf16.mxu0 0
        %969 = vmatpush1.bf16.msra.mxu0 0
        %970 = vmatprep.subr.bf16.mxu0 0
        %971 = vmatpush1.bf16.msra.mxu0 0
        %972 = vmatprep.subr.bf16.mxu0 0
        %973 = vmatpush1.bf16.msra.mxu0 0
        %974 = vmatprep.subr.bf16.mxu0 0
        %975 = vmatpush1.bf16.msra.mxu0 0
        %976 = vmatprep.subr.bf16.mxu0 0
        %977 = vmatpush1.bf16.msra.mxu0 0
        %978 = vmatprep.subr.bf16.mxu0 0
        %979 = vmatpush1.bf16.msra.mxu0 0
        %980 = vmatprep.subr.bf16.mxu0 0
        %981 = vmatpush1.bf16.msra.mxu0 0
        %982 = vmatprep.subr.bf16.mxu0 0
        %983 = vmatpush1.bf16.msra.mxu0 0
        %984 = vmatprep.subr.bf16.mxu0 0
        %985 = vmatpush1.bf16.msra.mxu0 0
        %986 = vmatprep.subr.bf16.mxu0 0
        %987 = vmatpush1.bf16.msra.mxu0 0
        %988 = vmatprep.subr.bf16.mxu0 0
        %989 = vmatpush1.bf16.msra.mxu0 0
        %990 = vmatprep.subr.bf16.mxu0 0
        %991 = vmatpush1.bf16.msra.mxu0 0
        %992 = vmatprep.mubr.bf16.mxu0 0
        %993 = vmatmul.mubr.bf16.gmra.mrb[0].mxu0 %v955
        %v994 = vpop.f32.mrb[0].mxu0
        %v995 = vadd.f32 0.0, %v994
        %v996 = vpop.f32.mrb[0].mxu0
        %v997 = vpop.f32.mrb[0].mxu0
        %v998 = vpop.f32.mrb[0].mxu0
        %999 = vdwg.mxu0
        %1001 = vrot.lane.b32.xlu0 %v771, 8
        %v1002 = vpop.permute.xlu0 %1001
        %1005 = vrot.lane.b32.xlu0 %v883, 16
        %v1006 = vpop.permute.xlu0 %1005
        %1009 = vrot.lane.b32.xlu0 %v995, 24
        %v1010 = vpop.permute.xlu0 %1009
        %v1012 = vsel %vm553, %v659, %v1002
        %vm1013 = vcmask 130048
        %v1014 = vsel %vm1013, %v1012, %v1006
        %vm1015 = vcmask 195584
        %v1016 = vsel %vm1015, %v1014, %v1010
        %v1017 = vpack.c.bf16 %v1016, %v1016
        %v1018 = vlaneseq
        %v1019 = vshrl.u32 %v1018, 7
        %v1020 = vsub.s32 6, %v1019
        %v1021 = vrot.slane %v414, %v1020
        %v1026 = vunpack.c.l.b16 %v398
        %v1027 = vunpack.c.l.b16 %v399
        %v1028 = vunpack.c.l.b16 %v400
        %v1029 = vunpack.c.l.b16 %v401
        %v1030 = vpack.c.b16 %v1027, %v1026
        %v1031 = vpack.c.b16 %v1029, %v1028
        %v1035 = vsel %vm429, %v1017, 0
        %1037 = vmatprep.subr.bf16.mxu0 0
        %1038 = vmatpush1.bf16.msra.mxu0 %v1030
        %1039 = vmatprep.subr.bf16.mxu0 0
        %1040 = vmatpush1.bf16.msra.mxu0 %v1031
        %1041 = vmatprep.subr.bf16.mxu0 0
        %1042 = vmatpush1.bf16.msra.mxu0 0
        %1043 = vmatprep.subr.bf16.mxu0 0
        %1044 = vmatpush1.bf16.msra.mxu0 0
        %1045 = vmatprep.subr.bf16.mxu0 0
        %1046 = vmatpush1.bf16.msra.mxu0 0
        %1047 = vmatprep.subr.bf16.mxu0 0
        %1048 = vmatpush1.bf16.msra.mxu0 0
        %1049 = vmatprep.subr.bf16.mxu0 0
        %1050 = vmatpush1.bf16.msra.mxu0 0
        %1051 = vmatprep.subr.bf16.mxu0 0
        %1052 = vmatpush1.bf16.msra.mxu0 0
        %1053 = vmatprep.subr.bf16.mxu0 0
        %1054 = vmatpush1.bf16.msra.mxu0 0
        %1055 = vmatprep.subr.bf16.mxu0 0
        %1056 = vmatpush1.bf16.msra.mxu0 0
        %1057 = vmatprep.subr.bf16.mxu0 0
        %1058 = vmatpush1.bf16.msra.mxu0 0
        %1059 = vmatprep.subr.bf16.mxu0 0
        %1060 = vmatpush1.bf16.msra.mxu0 0
        %1061 = vmatprep.subr.bf16.mxu0 0
        %1062 = vmatpush1.bf16.msra.mxu0 0
        %1063 = vmatprep.subr.bf16.mxu0 0
        %1064 = vmatpush1.bf16.msra.mxu0 0
        %1065 = vmatprep.subr.bf16.mxu0 0
        %1066 = vmatpush1.bf16.msra.mxu0 0
        %1067 = vmatprep.subr.bf16.mxu0 0
        %1068 = vmatpush1.bf16.msra.mxu0 0
        %1069 = vmatprep.mubr.bf16.mxu0 0
        %1070 = vmatmul.mubr.bf16.gmra.mrb[0].mxu0 %v1035
        %v1071 = vpop.f32.mrb[0].mxu0
        %v1072 = vadd.f32 %v1021, %v1071
        %v1073 = vpop.f32.mrb[0].mxu0
        %v1074 = vpop.f32.mrb[0].mxu0
        %v1075 = vpop.f32.mrb[0].mxu0
        %1076 = vdwg.mxu0
        %v1077 = vadd.f32 %v390, %v1072
        %v1078 = vsel %vm429, %v1077, 0.0
        %1079 = vadd.xlane.f32.xlu0 %v1078
        %v1080 = vpop.xlane.xlu0 %1079
        %v1081 = vmul.f32 %v1080, %v476
        %v1082 = vsub.f32 %v1077, %v1081
        %v1083 = vmul.f32 %v1082, %v1082
        %v1084 = vsel %vm429, %v1083, 0.0
        %1085 = vadd.xlane.f32.xlu0 %v1084
        %v1086 = vpop.xlane.xlu0 %1085
        %v1087 = vmul.f32 %v1086, %v476
        %v1088 = vadd.f32 %v1087, 1e-05
        %v1089 = vrsqrt.pop %v1088
        %v1090 = vmul.f32 %v1082, %v1089
        %v1091 = vlaneseq
        %v1092 = vshrl.u32 %v1091, 7
        %v1093 = vsub.s32 2, %v1092
        %v1094 = vrot.slane %v414, %v1093
        %v1095 = vmul.f32 %v1090, %v1094
        %v1096 = vlaneseq
        %v1097 = vshrl.u32 %v1096, 7
        %v1098 = vsub.s32 3, %v1097
        %v1099 = vrot.slane %v414, %v1098
        %v1100 = vadd.f32 %v1095, %v1099
        %v1101 = vpack.c.bf16 %v1100, %v1100
        %v1103 = vlaneseq
        %v1104 = vshrl.u32 %v1103, 7
        %v1105 = vsub.s32 0, %v1104
        %v1106 = vrot.slane %v415, %v1105
        %v1112 = vunpack.c.l.b16 %v402
        %v1113 = vunpack.c.l.b16 %v403
        %v1114 = vunpack.c.l.b16 %v404
        %v1115 = vunpack.c.l.b16 %v405
        %v1116 = vpack.c.b16 %v1113, %v1112
        %v1117 = vpack.c.b16 %v1115, %v1114
        %v1121 = vsel %vm429, %v1101, 0
        %1123 = vmatprep.subr.bf16.mxu0 0
        %1124 = vmatpush1.bf16.msra.mxu0 %v1116
        %1125 = vmatprep.subr.bf16.mxu0 0
        %1126 = vmatpush1.bf16.msra.mxu0 %v1117
        %1127 = vmatprep.subr.bf16.mxu0 0
        %1128 = vmatpush1.bf16.msra.mxu0 0
        %1129 = vmatprep.subr.bf16.mxu0 0
        %1130 = vmatpush1.bf16.msra.mxu0 0
        %1131 = vmatprep.subr.bf16.mxu0 0
        %1132 = vmatpush1.bf16.msra.mxu0 0
        %1133 = vmatprep.subr.bf16.mxu0 0
        %1134 = vmatpush1.bf16.msra.mxu0 0
        %1135 = vmatprep.subr.bf16.mxu0 0
        %1136 = vmatpush1.bf16.msra.mxu0 0
        %1137 = vmatprep.subr.bf16.mxu0 0
        %1138 = vmatpush1.bf16.msra.mxu0 0
        %1139 = vmatprep.subr.bf16.mxu0 0
        %1140 = vmatpush1.bf16.msra.mxu0 0
        %1141 = vmatprep.subr.bf16.mxu0 0
        %1142 = vmatpush1.bf16.msra.mxu0 0
        %1143 = vmatprep.subr.bf16.mxu0 0
        %1144 = vmatpush1.bf16.msra.mxu0 0
        %1145 = vmatprep.subr.bf16.mxu0 0
        %1146 = vmatpush1.bf16.msra.mxu0 0
        %1147 = vmatprep.subr.bf16.mxu0 0
        %1148 = vmatpush1.bf16.msra.mxu0 0
        %1149 = vmatprep.subr.bf16.mxu0 0
        %1150 = vmatpush1.bf16.msra.mxu0 0
        %1151 = vmatprep.subr.bf16.mxu0 0
        %1152 = vmatpush1.bf16.msra.mxu0 0
        %1153 = vmatprep.subr.bf16.mxu0 0
        %1154 = vmatpush1.bf16.msra.mxu0 0
        %1155 = vmatprep.mubr.bf16.mxu0 0
        %1156 = vmatmul.mubr.bf16.gmra.mrb[0].mxu0 %v1121
        %v1157 = vpop.f32.mrb[0].mxu0
        %v1158 = vadd.f32 %v1106, %v1157
        %v1159 = vpop.f32.mrb[0].mxu0
        %v1160 = vpop.f32.mrb[0].mxu0
        %v1161 = vpop.f32.mrb[0].mxu0
        %1162 = vdwg.mxu0
        %v1163 = vmul.f32 %v1158, %v1158
        %v1164 = vmul.f32 %v1158, %v1163
        %v1165 = vmul.f32 %v1164, 0.044715
        %v1166 = vadd.f32 %v1158, %v1165
        %v1167 = vmul.f32 %v1166, 0.7978846
        %v1168 = vtanh.pop %v1167
        %v1169 = vadd.f32 %v1168, 1.0
        %v1170 = vmul.f32 %v1169, 0.5
        %v1171 = vmul.f32 %v1158, %v1170
        %v1172 = vpack.c.bf16 %v1171, %v1171
        %v1173 = vlaneseq
        %v1174 = vshrl.u32 %v1173, 7
        %v1175 = vsub.s32 7, %v1174
        %v1176 = vrot.slane %v414, %v1175
        %v1185 = vunpack.c.l.b16 %v406
        %v1186 = vunpack.c.l.b16 %v407
        %v1187 = vunpack.c.l.b16 %v408
        %v1188 = vunpack.c.l.b16 %v409
        %v1189 = vunpack.c.l.b16 %v410
        %v1190 = vunpack.c.l.b16 %v411
        %v1191 = vunpack.c.l.b16 %v412
        %v1192 = vunpack.c.l.b16 %v413
        %v1193 = vpack.c.b16 %v1186, %v1185
        %v1194 = vpack.c.b16 %v1188, %v1187
        %v1195 = vpack.c.b16 %v1190, %v1189
        %v1196 = vpack.c.b16 %v1192, %v1191
        %vm1201 = vcmask 523264
        %v1203 = vsel %vm1201, %v1172, 0
        %1205 = vmatprep.subr.bf16.mxu0 0
        %1206 = vmatpush1.bf16.msra.mxu0 %v1193
        %1207 = vmatprep.subr.bf16.mxu0 0
        %1208 = vmatpush1.bf16.msra.mxu0 %v1194
        %1209 = vmatprep.subr.bf16.mxu0 0
        %1210 = vmatpush1.bf16.msra.mxu0 %v1195
        %1211 = vmatprep.subr.bf16.mxu0 0
        %1212 = vmatpush1.bf16.msra.mxu0 %v1196
        %1213 = vmatprep.subr.bf16.mxu0 0
        %1214 = vmatpush1.bf16.msra.mxu0 0
        %1215 = vmatprep.subr.bf16.mxu0 0
        %1216 = vmatpush1.bf16.msra.mxu0 0
        %1217 = vmatprep.subr.bf16.mxu0 0
        %1218 = vmatpush1.bf16.msra.mxu0 0
        %1219 = vmatprep.subr.bf16.mxu0 0
        %1220 = vmatpush1.bf16.msra.mxu0 0
        %1221 = vmatprep.subr.bf16.mxu0 0
        %1222 = vmatpush1.bf16.msra.mxu0 0
        %1223 = vmatprep.subr.bf16.mxu0 0
        %1224 = vmatpush1.bf16.msra.mxu0 0
        %1225 = vmatprep.subr.bf16.mxu0 0
        %1226 = vmatpush1.bf16.msra.mxu0 0
        %1227 = vmatprep.subr.bf16.mxu0 0
        %1228 = vmatpush1.bf16.msra.mxu0 0
        %1229 = vmatprep.subr.bf16.mxu0 0
        %1230 = vmatpush1.bf16.msra.mxu0 0
        %1231 = vmatprep.subr.bf16.mxu0 0
        %1232 = vmatpush1.bf16.msra.mxu0 0
        %1233 = vmatprep.subr.bf16.mxu0 0
        %1234 = vmatpush1.bf16.msra.mxu0 0
        %1235 = vmatprep.subr.bf16.mxu0 0
        %1236 = vmatpush1.bf16.msra.mxu0 0
        %1237 = vmatprep.mubr.bf16.mxu0 0
        %1238 = vmatmul.mubr.bf16.gmra.mrb[0].mxu0 %v1203
        %v1239 = vpop.f32.mrb[0].mxu0
        %v1240 = vadd.f32 %v1176, %v1239
        %v1241 = vpop.f32.mrb[0].mxu0
        %v1242 = vpop.f32.mrb[0].mxu0
        %v1243 = vpop.f32.mrb[0].mxu0
        %1244 = vdwg.mxu0
        %v1245 = vadd.f32 %v1077, %v1240
        %v1246 = vsel %vm429, %v1245, 0.0
        %1247 = vadd.xlane.f32.xlu0 %v1246
        %v1248 = vpop.xlane.xlu0 %1247
        %v1249 = vmul.f32 %v1248, %v476
        %v1250 = vsub.f32 %v1245, %v1249
        %v1251 = vmul.f32 %v1250, %v1250
        %v1252 = vsel %vm429, %v1251, 0.0
        %1253 = vadd.xlane.f32.xlu0 %v1252
        %v1254 = vpop.xlane.xlu0 %1253
        %v1255 = vmul.f32 %v1254, %v476
        %v1256 = vadd.f32 %v1255, 1e-05
        %v1257 = vrsqrt.pop %v1256
        %v1258 = vmul.f32 %v1250, %v1257
        %v1259 = vmul.f32 %v1258, %v490
        %v1260 = vadd.f32 %v1259, %v495
        %v1261 = vpack.c.bf16 %v1260, %v1260
        %v1263 = vsel %vm429, %v1261, 0
        %1265 = vmatprep.subr.bf16.mxu0 0
        %1266 = vmatpush1.bf16.msra.mxu0 %v425
        %1267 = vmatprep.subr.bf16.mxu0 0
        %1268 = vmatpush1.bf16.msra.mxu0 %v426
        %1269 = vmatprep.subr.bf16.mxu0 0
        %1270 = vmatpush1.bf16.msra.mxu0 0
        %1271 = vmatprep.subr.bf16.mxu0 0
        %1272 = vmatpush1.bf16.msra.mxu0 0
        %1273 = vmatprep.subr.bf16.mxu0 0
        %1274 = vmatpush1.bf16.msra.mxu0 0
        %1275 = vmatprep.subr.bf16.mxu0 0
        %1276 = vmatpush1.bf16.msra.mxu0 0
        %1277 = vmatprep.subr.bf16.mxu0 0
        %1278 = vmatpush1.bf16.msra.mxu0 0
        %1279 = vmatprep.subr.bf16.mxu0 0
        %1280 = vmatpush1.bf16.msra.mxu0 0
        %1281 = vmatprep.subr.bf16.mxu0 0
        %1282 = vmatpush1.bf16.msra.mxu0 0
        %1283 = vmatprep.subr.bf16.mxu0 0
        %1284 = vmatpush1.bf16.msra.mxu0 0
        %1285 = vmatprep.subr.bf16.mxu0 0
        %1286 = vmatpush1.bf16.msra.mxu0 0
        %1287 = vmatprep.subr.bf16.mxu0 0
        %1288 = vmatpush1.bf16.msra.mxu0 0
        %1289 = vmatprep.subr.bf16.mxu0 0
        %1290 = vmatpush1.bf16.msra.mxu0 0
        %1291 = vmatprep.subr.bf16.mxu0 0
        %1292 = vmatpush1.bf16.msra.mxu0 0
        %1293 = vmatprep.subr.bf16.mxu0 0
        %1294 = vmatpush1.bf16.msra.mxu0 0
        %1295 = vmatprep.subr.bf16.mxu0 0
        %1296 = vmatpush1.bf16.msra.mxu0 0
        %1297 = vmatprep.mubr.bf16.mxu0 0
        %1298 = vmatmul.mubr.bf16.gmra.mrb[0].mxu0 %v1263
        %v1299 = vpop.f32.mrb[0].mxu0
        %v1300 = vadd.f32 %v502, %v1299
        %v1301 = vpop.f32.mrb[0].mxu0
        %v1302 = vpop.f32.mrb[0].mxu0
        %v1303 = vpop.f32.mrb[0].mxu0
        %1304 = vdwg.mxu0
        %v1305 = vadd.f32 %v1300, %v468
        %v1306 = vpack.c.bf16 %v1305, %v1305
        %v1307 = vpack.c.bf16 %v1300, %v1300
        %1309 = vrot.lane.b32.xlu0 %v1306, 96
        %v1310 = vpop.permute.xlu0 %1309
        %v1312 = vsel %vm553, %v1306, 0
        %v1315 = vsel %vm553, %v1310, 0
        %1317 = vmatprep.subr.bf16.mxu0 0
        %1318 = vmatpush1.bf16.xpose.msra.mxu0 %v1315
        %1319 = vmatprep.subr.bf16.mxu0 0
        %1320 = vmatpush1.bf16.xpose.msra.mxu0 0
        %1321 = vmatprep.subr.bf16.mxu0 0
        %1322 = vmatpush1.bf16.xpose.msra.mxu0 0
        %1323 = vmatprep.subr.bf16.mxu0 0
        %1324 = vmatpush1.bf16.xpose.msra.mxu0 0
        %1325 = vmatprep.subr.bf16.mxu0 0
        %1326 = vmatpush1.bf16.xpose.msra.mxu0 0
        %1327 = vmatprep.subr.bf16.mxu0 0
        %1328 = vmatpush1.bf16.xpose.msra.mxu0 0
        %1329 = vmatprep.subr.bf16.mxu0 0
        %1330 = vmatpush1.bf16.xpose.msra.mxu0 0
        %1331 = vmatprep.subr.bf16.mxu0 0
        %1332 = vmatpush1.bf16.xpose.msra.mxu0 0
        %1333 = vmatprep.subr.bf16.mxu0 0
        %1334 = vmatpush1.bf16.xpose.msra.mxu0 0
        %1335 = vmatprep.subr.bf16.mxu0 0
        %1336 = vmatpush1.bf16.xpose.msra.mxu0 0
        %1337 = vmatprep.subr.bf16.mxu0 0
        %1338 = vmatpush1.bf16.xpose.msra.mxu0 0
        %1339 = vmatprep.subr.bf16.mxu0 0
        %1340 = vmatpush1.bf16.xpose.msra.mxu0 0
        %1341 = vmatprep.subr.bf16.mxu0 0
        %1342 = vmatpush1.bf16.xpose.msra.mxu0 0
        %1343 = vmatprep.subr.bf16.mxu0 0
        %1344 = vmatpush1.bf16.xpose.msra.mxu0 0
        %1345 = vmatprep.subr.bf16.mxu0 0
        %1346 = vmatpush1.bf16.xpose.msra.mxu0 0
        %1347 = vmatprep.subr.bf16.mxu0 0
        %1348 = vmatpush1.bf16.xpose.msra.mxu0 0
        %1349 = vmatprep.mubr.bf16.mxu0 0
        %1350 = vmatmul.mubr.bf16.gmra.mrb[0].mxu0 %v1312
        %v1351 = vpop.f32.mrb[0].mxu0
        %v1352 = vadd.f32 0.0, %v1351
        %v1353 = vpop.f32.mrb[0].mxu0
        %v1354 = vpop.f32.mrb[0].mxu0
        %v1355 = vpop.f32.mrb[0].mxu0
        %1356 = vdwg.mxu0
        %v1357 = vmul.f32 %v1352, 0.35355338
        %v1358 = vadd.f32 %v1357, %v392
        %v1359 = vsel %vm553, %v1358, -inf
        %1360 = vmax.xlane.f32.xlu0 %v1359
        %v1361 = vpop.xlane.xlu0 %1360
        %v1362 = vsub.f32 %v1358, %v1361
        %v1363 = vmul.f32 %v1362, 1.442695
        %v1364 = vpow.pop %v1363
        %v1365 = vsel %vm553, %v1364, 0.0
        %1366 = vadd.xlane.f32.xlu0 %v1365
        %v1367 = vpop.xlane.xlu0 %1366
        %v1368 = vrcp.pop %v1367
        %v1369 = vmul.f32 %v1364, %v1368
        %v1370 = vpack.c.bf16 %v1369, %v1369
        %1372 = vrot.lane.b32.xlu0 %v1307, 64
        %v1373 = vpop.permute.xlu0 %1372
        %v1375 = vsel %vm553, %v1370, 0
        %v1378 = vsel %vm620, %v1373, 0
        %1380 = vmatprep.subr.bf16.mxu0 0
        %1381 = vmatpush1.bf16.msra.mxu0 %v1378
        %1382 = vmatprep.subr.bf16.mxu0 0
        %1383 = vmatpush1.bf16.msra.mxu0 0
        %1384 = vmatprep.subr.bf16.mxu0 0
        %1385 = vmatpush1.bf16.msra.mxu0 0
        %1386 = vmatprep.subr.bf16.mxu0 0
        %1387 = vmatpush1.bf16.msra.mxu0 0
        %1388 = vmatprep.subr.bf16.mxu0 0
        %1389 = vmatpush1.bf16.msra.mxu0 0
        %1390 = vmatprep.subr.bf16.mxu0 0
        %1391 = vmatpush1.bf16.msra.mxu0 0
        %1392 = vmatprep.subr.bf16.mxu0 0
        %1393 = vmatpush1.bf16.msra.mxu0 0
        %1394 = vmatprep.subr.bf16.mxu0 0
        %1395 = vmatpush1.bf16.msra.mxu0 0
        %1396 = vmatprep.subr.bf16.mxu0 0
        %1397 = vmatpush1.bf16.msra.mxu0 0
        %1398 = vmatprep.subr.bf16.mxu0 0
        %1399 = vmatpush1.bf16.msra.mxu0 0
        %1400 = vmatprep.subr.bf16.mxu0 0
        %1401 = vmatpush1.bf16.msra.mxu0 0
        %1402 = vmatprep.subr.bf16.mxu0 0
        %1403 = vmatpush1.bf16.msra.mxu0 0
        %1404 = vmatprep.subr.bf16.mxu0 0
        %1405 = vmatpush1.bf16.msra.mxu0 0
        %1406 = vmatprep.subr.bf16.mxu0 0
        %1407 = vmatpush1.bf16.msra.mxu0 0
        %1408 = vmatprep.subr.bf16.mxu0 0
        %1409 = vmatpush1.bf16.msra.mxu0 0
        %1410 = vmatprep.subr.bf16.mxu0 0
        %1411 = vmatpush1.bf16.msra.mxu0 0
        %1412 = vmatprep.mubr.bf16.mxu0 0
        %1413 = vmatmul.mubr.bf16.gmra.mrb[0].mxu0 %v1375
        %v1414 = vpop.f32.mrb[0].mxu0
        %v1415 = vadd.f32 0.0, %v1414
        %v1416 = vpop.f32.mrb[0].mxu0
        %v1417 = vpop.f32.mrb[0].mxu0
        %v1418 = vpop.f32.mrb[0].mxu0
        %1419 = vdwg.mxu0
        %1420 = vrot.lane.b32.xlu0 %v1306, 120
        %v1421 = vpop.permute.xlu0 %1420
        %1422 = vrot.lane.b32.xlu0 %v1306, 88
        %v1423 = vpop.permute.xlu0 %1422
        %v1425 = vsel %vm553, %v1421, 0
        %v1428 = vsel %vm553, %v1423, 0
        %1430 = vmatprep.subr.bf16.mxu0 0
        %1431 = vmatpush1.bf16.xpose.msra.mxu0 %v1428
        %1432 = vmatprep.subr.bf16.mxu0 0
        %1433 = vmatpush1.bf16.xpose.msra.mxu0 0
        %1434 = vmatprep.subr.bf16.mxu0 0
        %1435 = vmatpush1.bf16.xpose.msra.mxu0 0
        %1436 = vmatprep.subr.bf16.mxu0 0
        %1437 = vmatpush1.bf16.xpose.msra.mxu0 0
        %1438 = vmatprep.subr.bf16.mxu0 0
        %1439 = vmatpush1.bf16.xpose.msra.mxu0 0
        %1440 = vmatprep.subr.bf16.mxu0 0
        %1441 = vmatpush1.bf16.xpose.msra.mxu0 0
        %1442 = vmatprep.subr.bf16.mxu0 0
        %1443 = vmatpush1.bf16.xpose.msra.mxu0 0
        %1444 = vmatprep.subr.bf16.mxu0 0
        %1445 = vmatpush1.bf16.xpose.msra.mxu0 0
        %1446 = vmatprep.subr.bf16.mxu0 0
        %1447 = vmatpush1.bf16.xpose.msra.mxu0 0
        %1448 = vmatprep.subr.bf16.mxu0 0
        %1449 = vmatpush1.bf16.xpose.msra.mxu0 0
        %1450 = vmatprep.subr.bf16.mxu0 0
        %1451 = vmatpush1.bf16.xpose.msra.mxu0 0
        %1452 = vmatprep.subr.bf16.mxu0 0
        %1453 = vmatpush1.bf16.xpose.msra.mxu0 0
        %1454 = vmatprep.subr.bf16.mxu0 0
        %1455 = vmatpush1.bf16.xpose.msra.mxu0 0
        %1456 = vmatprep.subr.bf16.mxu0 0
        %1457 = vmatpush1.bf16.xpose.msra.mxu0 0
        %1458 = vmatprep.subr.bf16.mxu0 0
        %1459 = vmatpush1.bf16.xpose.msra.mxu0 0
        %1460 = vmatprep.subr.bf16.mxu0 0
        %1461 = vmatpush1.bf16.xpose.msra.mxu0 0
        %1462 = vmatprep.mubr.bf16.mxu0 0
        %1463 = vmatmul.mubr.bf16.gmra.mrb[0].mxu0 %v1425
        %v1464 = vpop.f32.mrb[0].mxu0
        %v1465 = vadd.f32 0.0, %v1464
        %v1466 = vpop.f32.mrb[0].mxu0
        %v1467 = vpop.f32.mrb[0].mxu0
        %v1468 = vpop.f32.mrb[0].mxu0
        %1469 = vdwg.mxu0
        %v1470 = vmul.f32 %v1465, 0.35355338
        %v1471 = vadd.f32 %v1470, %v392
        %v1472 = vsel %vm553, %v1471, -inf
        %1473 = vmax.xlane.f32.xlu0 %v1472
        %v1474 = vpop.xlane.xlu0 %1473
        %v1475 = vsub.f32 %v1471, %v1474
        %v1476 = vmul.f32 %v1475, 1.442695
        %v1477 = vpow.pop %v1476
        %v1478 = vsel %vm553, %v1477, 0.0
        %1479 = vadd.xlane.f32.xlu0 %v1478
        %v1480 = vpop.xlane.xlu0 %1479
        %v1481 = vrcp.pop %v1480
        %v1482 = vmul.f32 %v1477, %v1481
        %v1483 = vpack.c.bf16 %v1482, %v1482
        %1484 = vrot.lane.b32.xlu0 %v1307, 56
        %v1485 = vpop.permute.xlu0 %1484
        %v1487 = vsel %vm553, %v1483, 0
        %v1490 = vsel %vm620, %v1485, 0
        %1492 = vmatprep.subr.bf16.mxu0 0
        %1493 = vmatpush1.bf16.msra.mxu0 %v1490
        %1494 = vmatprep.subr.bf16.mxu0 0
        %1495 = vmatpush1.bf16.msra.mxu0 0
        %1496 = vmatprep.subr.bf16.mxu0 0
        %1497 = vmatpush1.bf16.msra.mxu0 0
        %1498 = vmatprep.subr.bf16.mxu0 0
        %1499 = vmatpush1.bf16.msra.mxu0 0
        %1500 = vmatprep.subr.bf16.mxu0 0
        %1501 = vmatpush1.bf16.msra.mxu0 0
        %1502 = vmatprep.subr.bf16.mxu0 0
        %1503 = vmatpush1.bf16.msra.mxu0 0
        %1504 = vmatprep.subr.bf16.mxu0 0
        %1505 = vmatpush1.bf16.msra.mxu0 0
        %1506 = vmatprep.subr.bf16.mxu0 0
        %1507 = vmatpush1.bf16.msra.mxu0 0
        %1508 = vmatprep.subr.bf16.mxu0 0
        %1509 = vmatpush1.bf16.msra.mxu0 0
        %1510 = vmatprep.subr.bf16.mxu0 0
        %1511 = vmatpush1.bf16.msra.mxu0 0
        %1512 = vmatprep.subr.bf16.mxu0 0
        %1513 = vmatpush1.bf16.msra.mxu0 0
        %1514 = vmatprep.subr.bf16.mxu0 0
        %1515 = vmatpush1.bf16.msra.mxu0 0
        %1516 = vmatprep.subr.bf16.mxu0 0
        %1517 = vmatpush1.bf16.msra.mxu0 0
        %1518 = vmatprep.subr.bf16.mxu0 0
        %1519 = vmatpush1.bf16.msra.mxu0 0
        %1520 = vmatprep.subr.bf16.mxu0 0
        %1521 = vmatpush1.bf16.msra.mxu0 0
        %1522 = vmatprep.subr.bf16.mxu0 0
        %1523 = vmatpush1.bf16.msra.mxu0 0
        %1524 = vmatprep.mubr.bf16.mxu0 0
        %1525 = vmatmul.mubr.bf16.gmra.mrb[0].mxu0 %v1487
        %v1526 = vpop.f32.mrb[0].mxu0
        %v1527 = vadd.f32 0.0, %v1526
        %v1528 = vpop.f32.mrb[0].mxu0
        %v1529 = vpop.f32.mrb[0].mxu0
        %v1530 = vpop.f32.mrb[0].mxu0
        %1531 = vdwg.mxu0
        %1532 = vrot.lane.b32.xlu0 %v1306, 112
        %v1533 = vpop.permute.xlu0 %1532
        %1534 = vrot.lane.b32.xlu0 %v1306, 80
        %v1535 = vpop.permute.xlu0 %1534
        %v1537 = vsel %vm553, %v1533, 0
        %v1540 = vsel %vm553, %v1535, 0
        %1542 = vmatprep.subr.bf16.mxu0 0
        %1543 = vmatpush1.bf16.xpose.msra.mxu0 %v1540
        %1544 = vmatprep.subr.bf16.mxu0 0
        %1545 = vmatpush1.bf16.xpose.msra.mxu0 0
        %1546 = vmatprep.subr.bf16.mxu0 0
        %1547 = vmatpush1.bf16.xpose.msra.mxu0 0
        %1548 = vmatprep.subr.bf16.mxu0 0
        %1549 = vmatpush1.bf16.xpose.msra.mxu0 0
        %1550 = vmatprep.subr.bf16.mxu0 0
        %1551 = vmatpush1.bf16.xpose.msra.mxu0 0
        %1552 = vmatprep.subr.bf16.mxu0 0
        %1553 = vmatpush1.bf16.xpose.msra.mxu0 0
        %1554 = vmatprep.subr.bf16.mxu0 0
        %1555 = vmatpush1.bf16.xpose.msra.mxu0 0
        %1556 = vmatprep.subr.bf16.mxu0 0
        %1557 = vmatpush1.bf16.xpose.msra.mxu0 0
        %1558 = vmatprep.subr.bf16.mxu0 0
        %1559 = vmatpush1.bf16.xpose.msra.mxu0 0
        %1560 = vmatprep.subr.bf16.mxu0 0
        %1561 = vmatpush1.bf16.xpose.msra.mxu0 0
        %1562 = vmatprep.subr.bf16.mxu0 0
        %1563 = vmatpush1.bf16.xpose.msra.mxu0 0
        %1564 = vmatprep.subr.bf16.mxu0 0
        %1565 = vmatpush1.bf16.xpose.msra.mxu0 0
        %1566 = vmatprep.subr.bf16.mxu0 0
        %1567 = vmatpush1.bf16.xpose.msra.mxu0 0
        %1568 = vmatprep.subr.bf16.mxu0 0
        %1569 = vmatpush1.bf16.xpose.msra.mxu0 0
        %1570 = vmatprep.subr.bf16.mxu0 0
        %1571 = vmatpush1.bf16.xpose.msra.mxu0 0
        %1572 = vmatprep.subr.bf16.mxu0 0
        %1573 = vmatpush1.bf16.xpose.msra.mxu0 0
        %1574 = vmatprep.mubr.bf16.mxu0 0
        %1575 = vmatmul.mubr.bf16.gmra.mrb[0].mxu0 %v1537
        %v1576 = vpop.f32.mrb[0].mxu0
        %v1577 = vadd.f32 0.0, %v1576
        %v1578 = vpop.f32.mrb[0].mxu0
        %v1579 = vpop.f32.mrb[0].mxu0
        %v1580 = vpop.f32.mrb[0].mxu0
        %1581 = vdwg.mxu0
        %v1582 = vmul.f32 %v1577, 0.35355338
        %v1583 = vadd.f32 %v1582, %v392
        %v1584 = vsel %vm553, %v1583, -inf
        %1585 = vmax.xlane.f32.xlu0 %v1584
        %v1586 = vpop.xlane.xlu0 %1585
        %v1587 = vsub.f32 %v1583, %v1586
        %v1588 = vmul.f32 %v1587, 1.442695
        %v1589 = vpow.pop %v1588
        %v1590 = vsel %vm553, %v1589, 0.0
        %1591 = vadd.xlane.f32.xlu0 %v1590
        %v1592 = vpop.xlane.xlu0 %1591
        %v1593 = vrcp.pop %v1592
        %v1594 = vmul.f32 %v1589, %v1593
        %v1595 = vpack.c.bf16 %v1594, %v1594
        %1596 = vrot.lane.b32.xlu0 %v1307, 48
        %v1597 = vpop.permute.xlu0 %1596
        %v1599 = vsel %vm553, %v1595, 0
        %v1602 = vsel %vm620, %v1597, 0
        %1604 = vmatprep.subr.bf16.mxu0 0
        %1605 = vmatpush1.bf16.msra.mxu0 %v1602
        %1606 = vmatprep.subr.bf16.mxu0 0
        %1607 = vmatpush1.bf16.msra.mxu0 0
        %1608 = vmatprep.subr.bf16.mxu0 0
        %1609 = vmatpush1.bf16.msra.mxu0 0
        %1610 = vmatprep.subr.bf16.mxu0 0
        %1611 = vmatpush1.bf16.msra.mxu0 0
        %1612 = vmatprep.subr.bf16.mxu0 0
        %1613 = vmatpush1.bf16.msra.mxu0 0
        %1614 = vmatprep.subr.bf16.mxu0 0
        %1615 = vmatpush1.bf16.msra.mxu0 0
        %1616 = vmatprep.subr.bf16.mxu0 0
        %1617 = vmatpush1.bf16.msra.mxu0 0
        %1618 = vmatprep.subr.bf16.mxu0 0
        %1619 = vmatpush1.bf16.msra.mxu0 0
        %1620 = vmatprep.subr.bf16.mxu0 0
        %1621 = vmatpush1.bf16.msra.mxu0 0
        %1622 = vmatprep.subr.bf16.mxu0 0
        %1623 = vmatpush1.bf16.msra.mxu0 0
        %1624 = vmatprep.subr.bf16.mxu0 0
        %1625 = vmatpush1.bf16.msra.mxu0 0
        %1626 = vmatprep.subr.bf16.mxu0 0
        %1627 = vmatpush1.bf16.msra.mxu0 0
        %1628 = vmatprep.subr.bf16.mxu0 0
        %1629 = vmatpush1.bf16.msra.mxu0 0
        %1630 = vmatprep.subr.bf16.mxu0 0
        %1631 = vmatpush1.bf16.msra.mxu0 0
        %1632 = vmatprep.subr.bf16.mxu0 0
        %1633 = vmatpush1.bf16.msra.mxu0 0
        %1634 = vmatprep.subr.bf16.mxu0 0
        %1635 = vmatpush1.bf16.msra.mxu0 0
        %1636 = vmatprep.mubr.bf16.mxu0 0
        %1637 = vmatmul.mubr.bf16.gmra.mrb[0].mxu0 %v1599
        %v1638 = vpop.f32.mrb[0].mxu0
        %v1639 = vadd.f32 0.0, %v1638
        %v1640 = vpop.f32.mrb[0].mxu0
        %v1641 = vpop.f32.mrb[0].mxu0
        %v1642 = vpop.f32.mrb[0].mxu0
        %1643 = vdwg.mxu0
        %1644 = vrot.lane.b32.xlu0 %v1306, 104
        %v1645 = vpop.permute.xlu0 %1644
        %1646 = vrot.lane.b32.xlu0 %v1306, 72
        %v1647 = vpop.permute.xlu0 %1646
        %v1649 = vsel %vm553, %v1645, 0
        %v1652 = vsel %vm553, %v1647, 0
        %1654 = vmatprep.subr.bf16.mxu0 0
        %1655 = vmatpush1.bf16.xpose.msra.mxu0 %v1652
        %1656 = vmatprep.subr.bf16.mxu0 0
        %1657 = vmatpush1.bf16.xpose.msra.mxu0 0
        %1658 = vmatprep.subr.bf16.mxu0 0
        %1659 = vmatpush1.bf16.xpose.msra.mxu0 0
        %1660 = vmatprep.subr.bf16.mxu0 0
        %1661 = vmatpush1.bf16.xpose.msra.mxu0 0
        %1662 = vmatprep.subr.bf16.mxu0 0
        %1663 = vmatpush1.bf16.xpose.msra.mxu0 0
        %1664 = vmatprep.subr.bf16.mxu0 0
        %1665 = vmatpush1.bf16.xpose.msra.mxu0 0
        %1666 = vmatprep.subr.bf16.mxu0 0
        %1667 = vmatpush1.bf16.xpose.msra.mxu0 0
        %1668 = vmatprep.subr.bf16.mxu0 0
        %1669 = vmatpush1.bf16.xpose.msra.mxu0 0
        %1670 = vmatprep.subr.bf16.mxu0 0
        %1671 = vmatpush1.bf16.xpose.msra.mxu0 0
        %1672 = vmatprep.subr.bf16.mxu0 0
        %1673 = vmatpush1.bf16.xpose.msra.mxu0 0
        %1674 = vmatprep.subr.bf16.mxu0 0
        %1675 = vmatpush1.bf16.xpose.msra.mxu0 0
        %1676 = vmatprep.subr.bf16.mxu0 0
        %1677 = vmatpush1.bf16.xpose.msra.mxu0 0
        %1678 = vmatprep.subr.bf16.mxu0 0
        %1679 = vmatpush1.bf16.xpose.msra.mxu0 0
        %1680 = vmatprep.subr.bf16.mxu0 0
        %1681 = vmatpush1.bf16.xpose.msra.mxu0 0
        %1682 = vmatprep.subr.bf16.mxu0 0
        %1683 = vmatpush1.bf16.xpose.msra.mxu0 0
        %1684 = vmatprep.subr.bf16.mxu0 0
        %1685 = vmatpush1.bf16.xpose.msra.mxu0 0
        %1686 = vmatprep.mubr.bf16.mxu0 0
        %1687 = vmatmul.mubr.bf16.gmra.mrb[0].mxu0 %v1649
        %v1688 = vpop.f32.mrb[0].mxu0
        %v1689 = vadd.f32 0.0, %v1688
        %v1690 = vpop.f32.mrb[0].mxu0
        %v1691 = vpop.f32.mrb[0].mxu0
        %v1692 = vpop.f32.mrb[0].mxu0
        %1693 = vdwg.mxu0
        %v1694 = vmul.f32 %v1689, 0.35355338
        %v1695 = vadd.f32 %v1694, %v392
        %v1696 = vsel %vm553, %v1695, -inf
        %1697 = vmax.xlane.f32.xlu0 %v1696
        %v1698 = vpop.xlane.xlu0 %1697
        %v1699 = vsub.f32 %v1695, %v1698
        %v1700 = vmul.f32 %v1699, 1.442695
        %v1701 = vpow.pop %v1700
        %v1702 = vsel %vm553, %v1701, 0.0
        %1703 = vadd.xlane.f32.xlu0 %v1702
        %v1704 = vpop.xlane.xlu0 %1703
        %v1705 = vrcp.pop %v1704
        %v1706 = vmul.f32 %v1701, %v1705
        %v1707 = vpack.c.bf16 %v1706, %v1706
        %1708 = vrot.lane.b32.xlu0 %v1307, 40
        %v1709 = vpop.permute.xlu0 %1708
        %v1711 = vsel %vm553, %v1707, 0
        %v1714 = vsel %vm620, %v1709, 0
        %1716 = vmatprep.subr.bf16.mxu0 0
        %1717 = vmatpush1.bf16.msra.mxu0 %v1714
        %1718 = vmatprep.subr.bf16.mxu0 0
        %1719 = vmatpush1.bf16.msra.mxu0 0
        %1720 = vmatprep.subr.bf16.mxu0 0
        %1721 = vmatpush1.bf16.msra.mxu0 0
        %1722 = vmatprep.subr.bf16.mxu0 0
        %1723 = vmatpush1.bf16.msra.mxu0 0
        %1724 = vmatprep.subr.bf16.mxu0 0
        %1725 = vmatpush1.bf16.msra.mxu0 0
        %1726 = vmatprep.subr.bf16.mxu0 0
        %1727 = vmatpush1.bf16.msra.mxu0 0
        %1728 = vmatprep.subr.bf16.mxu0 0
        %1729 = vmatpush1.bf16.msra.mxu0 0
        %1730 = vmatprep.subr.bf16.mxu0 0
        %1731 = vmatpush1.bf16.msra.mxu0 0
        %1732 = vmatprep.subr.bf16.mxu0 0
        %1733 = vmatpush1.bf16.msra.mxu0 0
        %1734 = vmatprep.subr.bf16.mxu0 0
        %1735 = vmatpush1.bf16.msra.mxu0 0
        %1736 = vmatprep.subr.bf16.mxu0 0
        %1737 = vmatpush1.bf16.msra.mxu0 0
        %1738 = vmatprep.subr.bf16.mxu0 0
        %1739 = vmatpush1.bf16.msra.mxu0 0
        %1740 = vmatprep.subr.bf16.mxu0 0
        %1741 = vmatpush1.bf16.msra.mxu0 0
        %1742 = vmatprep.subr.bf16.mxu0 0
        %1743 = vmatpush1.bf16.msra.mxu0 0
        %1744 = vmatprep.subr.bf16.mxu0 0
        %1745 = vmatpush1.bf16.msra.mxu0 0
        %1746 = vmatprep.subr.bf16.mxu0 0
        %1747 = vmatpush1.bf16.msra.mxu0 0
        %1748 = vmatprep.mubr.bf16.mxu0 0
        %1749 = vmatmul.mubr.bf16.gmra.mrb[0].mxu0 %v1711
        %v1750 = vpop.f32.mrb[0].mxu0
        %v1751 = vadd.f32 0.0, %v1750
        %v1752 = vpop.f32.mrb[0].mxu0
        %v1753 = vpop.f32.mrb[0].mxu0
        %v1754 = vpop.f32.mrb[0].mxu0
        %1755 = vdwg.mxu0
        %1757 = vrot.lane.b32.xlu0 %v1527, 8
        %v1758 = vpop.permute.xlu0 %1757
        %1761 = vrot.lane.b32.xlu0 %v1639, 16
        %v1762 = vpop.permute.xlu0 %1761
        %1765 = vrot.lane.b32.xlu0 %v1751, 24
        %v1766 = vpop.permute.xlu0 %1765
        %v1768 = vsel %vm553, %v1415, %v1758
        %v1769 = vsel %vm1013, %v1768, %v1762
        %v1770 = vsel %vm1015, %v1769, %v1766
        %v1771 = vpack.c.bf16 %v1770, %v1770
        %v1773 = vsel %vm429, %v1771, 0
        %1775 = vmatprep.subr.bf16.mxu0 0
        %1776 = vmatpush1.bf16.msra.mxu0 %v1030
        %1777 = vmatprep.subr.bf16.mxu0 0
        %1778 = vmatpush1.bf16.msra.mxu0 %v1031
        %1779 = vmatprep.subr.bf16.mxu0 0
        %1780 = vmatpush1.bf16.msra.mxu0 0
        %1781 = vmatprep.subr.bf16.mxu0 0
        %1782 = vmatpush1.bf16.msra.mxu0 0
        %1783 = vmatprep.subr.bf16.mxu0 0
        %1784 = vmatpush1.bf16.msra.mxu0 0
        %1785 = vmatprep.subr.bf16.mxu0 0
        %1786 = vmatpush1.bf16.msra.mxu0 0
        %1787 = vmatprep.subr.bf16.mxu0 0
        %1788 = vmatpush1.bf16.msra.mxu0 0
        %1789 = vmatprep.subr.bf16.mxu0 0
        %1790 = vmatpush1.bf16.msra.mxu0 0
        %1791 = vmatprep.subr.bf16.mxu0 0
        %1792 = vmatpush1.bf16.msra.mxu0 0
        %1793 = vmatprep.subr.bf16.mxu0 0
        %1794 = vmatpush1.bf16.msra.mxu0 0
        %1795 = vmatprep.subr.bf16.mxu0 0
        %1796 = vmatpush1.bf16.msra.mxu0 0
        %1797 = vmatprep.subr.bf16.mxu0 0
        %1798 = vmatpush1.bf16.msra.mxu0 0
        %1799 = vmatprep.subr.bf16.mxu0 0
        %1800 = vmatpush1.bf16.msra.mxu0 0
        %1801 = vmatprep.subr.bf16.mxu0 0
        %1802 = vmatpush1.bf16.msra.mxu0 0
        %1803 = vmatprep.subr.bf16.mxu0 0
        %1804 = vmatpush1.bf16.msra.mxu0 0
        %1805 = vmatprep.subr.bf16.mxu0 0
        %1806 = vmatpush1.bf16.msra.mxu0 0
        %1807 = vmatprep.mubr.bf16.mxu0 0
        %1808 = vmatmul.mubr.bf16.gmra.mrb[0].mxu0 %v1773
        %v1809 = vpop.f32.mrb[0].mxu0
        %v1810 = vadd.f32 %v1021, %v1809
        %v1811 = vpop.f32.mrb[0].mxu0
        %v1812 = vpop.f32.mrb[0].mxu0
        %v1813 = vpop.f32.mrb[0].mxu0
        %1814 = vdwg.mxu0
        %v1815 = vadd.f32 %v1245, %v1810
        %v1816 = vsel %vm429, %v1815, 0.0
        %1817 = vadd.xlane.f32.xlu0 %v1816
        %v1818 = vpop.xlane.xlu0 %1817
        %v1819 = vmul.f32 %v1818, %v476
        %v1820 = vsub.f32 %v1815, %v1819
        %v1821 = vmul.f32 %v1820, %v1820
        %v1822 = vsel %vm429, %v1821, 0.0
        %1823 = vadd.xlane.f32.xlu0 %v1822
        %v1824 = vpop.xlane.xlu0 %1823
        %v1825 = vmul.f32 %v1824, %v476
        %v1826 = vadd.f32 %v1825, 1e-05
        %v1827 = vrsqrt.pop %v1826
        %v1828 = vmul.f32 %v1820, %v1827
        %v1829 = vmul.f32 %v1828, %v1094
        %v1830 = vadd.f32 %v1829, %v1099
        %v1831 = vpack.c.bf16 %v1830, %v1830
        %v1833 = vsel %vm429, %v1831, 0
        %1835 = vmatprep.subr.bf16.mxu0 0
        %1836 = vmatpush1.bf16.msra.mxu0 %v1116
        %1837 = vmatprep.subr.bf16.mxu0 0
        %1838 = vmatpush1.bf16.msra.mxu0 %v1117
        %1839 = vmatprep.subr.bf16.mxu0 0
        %1840 = vmatpush1.bf16.msra.mxu0 0
        %1841 = vmatprep.subr.bf16.mxu0 0
        %1842 = vmatpush1.bf16.msra.mxu0 0
        %1843 = vmatprep.subr.bf16.mxu0 0
        %1844 = vmatpush1.bf16.msra.mxu0 0
        %1845 = vmatprep.subr.bf16.mxu0 0
        %1846 = vmatpush1.bf16.msra.mxu0 0
        %1847 = vmatprep.subr.bf16.mxu0 0
        %1848 = vmatpush1.bf16.msra.mxu0 0
        %1849 = vmatprep.subr.bf16.mxu0 0
        %1850 = vmatpush1.bf16.msra.mxu0 0
        %1851 = vmatprep.subr.bf16.mxu0 0
        %1852 = vmatpush1.bf16.msra.mxu0 0
        %1853 = vmatprep.subr.bf16.mxu0 0
        %1854 = vmatpush1.bf16.msra.mxu0 0
        %1855 = vmatprep.subr.bf16.mxu0 0
        %1856 = vmatpush1.bf16.msra.mxu0 0
        %1857 = vmatprep.subr.bf16.mxu0 0
        %1858 = vmatpush1.bf16.msra.mxu0 0
        %1859 = vmatprep.subr.bf16.mxu0 0
        %1860 = vmatpush1.bf16.msra.mxu0 0
        %1861 = vmatprep.subr.bf16.mxu0 0
        %1862 = vmatpush1.bf16.msra.mxu0 0
        %1863 = vmatprep.subr.bf16.mxu0 0
        %1864 = vmatpush1.bf16.msra.mxu0 0
        %1865 = vmatprep.subr.bf16.mxu0 0
        %1866 = vmatpush1.bf16.msra.mxu0 0
        %1867 = vmatprep.mubr.bf16.mxu0 0
        %1868 = vmatmul.mubr.bf16.gmra.mrb[0].mxu0 %v1833
        %v1869 = vpop.f32.mrb[0].mxu0
        %v1870 = vadd.f32 %v1106, %v1869
        %v1871 = vpop.f32.mrb[0].mxu0
        %v1872 = vpop.f32.mrb[0].mxu0
        %v1873 = vpop.f32.mrb[0].mxu0
        %1874 = vdwg.mxu0
        %v1875 = vmul.f32 %v1870, %v1870
        %v1876 = vmul.f32 %v1870, %v1875
        %v1877 = vmul.f32 %v1876, 0.044715
        %v1878 = vadd.f32 %v1870, %v1877
        %v1879 = vmul.f32 %v1878, 0.7978846
        %v1880 = vtanh.pop %v1879
        %v1881 = vadd.f32 %v1880, 1.0
        %v1882 = vmul.f32 %v1881, 0.5
        %v1883 = vmul.f32 %v1870, %v1882
        %v1884 = vpack.c.bf16 %v1883, %v1883
        %v1886 = vsel %vm1201, %v1884, 0
        %1888 = vmatprep.subr.bf16.mxu0 0
        %1889 = vmatpush1.bf16.msra.mxu0 %v1193
        %1890 = vmatprep.subr.bf16.mxu0 0
        %1891 = vmatpush1.bf16.msra.mxu0 %v1194
        %1892 = vmatprep.subr.bf16.mxu0 0
        %1893 = vmatpush1.bf16.msra.mxu0 %v1195
        %1894 = vmatprep.subr.bf16.mxu0 0
        %1895 = vmatpush1.bf16.msra.mxu0 %v1196
        %1896 = vmatprep.subr.bf16.mxu0 0
        %1897 = vmatpush1.bf16.msra.mxu0 0
        %1898 = vmatprep.subr.bf16.mxu0 0
        %1899 = vmatpush1.bf16.msra.mxu0 0
        %1900 = vmatprep.subr.bf16.mxu0 0
        %1901 = vmatpush1.bf16.msra.mxu0 0
        %1902 = vmatprep.subr.bf16.mxu0 0
        %1903 = vmatpush1.bf16.msra.mxu0 0
        %1904 = vmatprep.subr.bf16.mxu0 0
        %1905 = vmatpush1.bf16.msra.mxu0 0
        %1906 = vmatprep.subr.bf16.mxu0 0
        %1907 = vmatpush1.bf16.msra.mxu0 0
        %1908 = vmatprep.subr.bf16.mxu0 0
        %1909 = vmatpush1.bf16.msra.mxu0 0
        %1910 = vmatprep.subr.bf16.mxu0 0
        %1911 = vmatpush1.bf16.msra.mxu0 0
        %1912 = vmatprep.subr.bf16.mxu0 0
        %1913 = vmatpush1.bf16.msra.mxu0 0
        %1914 = vmatprep.subr.bf16.mxu0 0
        %1915 = vmatpush1.bf16.msra.mxu0 0
        %1916 = vmatprep.subr.bf16.mxu0 0
        %1917 = vmatpush1.bf16.msra.mxu0 0
        %1918 = vmatprep.subr.bf16.mxu0 0
        %1919 = vmatpush1.bf16.msra.mxu0 0
        %1920 = vmatprep.mubr.bf16.mxu0 0
        %1921 = vmatmul.mubr.bf16.gmra.mrb[0].mxu0 %v1886
        %v1922 = vpop.f32.mrb[0].mxu0
        %v1923 = vadd.f32 %v1176, %v1922
        %v1924 = vpop.f32.mrb[0].mxu0
        %v1925 = vpop.f32.mrb[0].mxu0
        %v1926 = vpop.f32.mrb[0].mxu0
        %1927 = vdwg.mxu0
        %v1928 = vadd.f32 %v1815, %v1923
        %v1929 = vsel %vm429, %v1928, 0.0
        %1930 = vadd.xlane.f32.xlu0 %v1929
        %v1931 = vpop.xlane.xlu0 %1930
        %v1932 = vmul.f32 %v1931, %v476
        %v1933 = vsub.f32 %v1928, %v1932
        %v1934 = vmul.f32 %v1933, %v1933
        %v1935 = vsel %vm429, %v1934, 0.0
        %1936 = vadd.xlane.f32.xlu0 %v1935
        %v1937 = vpop.xlane.xlu0 %1936
        %v1938 = vmul.f32 %v1937, %v476
        %v1939 = vadd.f32 %v1938, 1e-05
        %v1940 = vrsqrt.pop %v1939
        %v1941 = vmul.f32 %v1933, %v1940
        %v1942 = vlaneseq
        %v1943 = vshrl.u32 %v1942, 7
        %v1944 = vsub.s32 4, %v1943
        %v1945 = vrot.slane %v414, %v1944
        %v1946 = vmul.f32 %v1941, %v1945
        %v1947 = vlaneseq
        %v1948 = vshrl.u32 %v1947, 7
        %v1949 = vsub.s32 5, %v1948
        %v1950 = vrot.slane %v414, %v1949
        %v1951 = vadd.f32 %v1946, %v1950
        %1952 = vst.msk [vmem:[%s376] sm:$0xff] %vm429, %v1951
        %s1953 = sand.u32 %s257, 1
        %s1954 = scalar_lea.sflag [#allocation3], %s1953
        %s1955 = sand.u32 %s257, 1
        %s1956 = smul.addr %s1955, 8
        %s1957 = scalar_lea.vmem [#allocation2], %s1956
        // Predicated region
        $region61: #{gpt_decoder_forward.1} parent=59 // pred_check
          %p1958 = pneg %p267
        $region62: #{gpt_decoder_forward.1} parent=59 // pred_check_branch
          %1960 = sbr.rel (%p1958) target = $region64
        $region63: #{gpt_decoder_forward.1} parent=59 // pred_region
          %s1962 = ssub.s32 128, 128
          %1963 = vsyncadd %s1954, %s1962
          %s1964 = smul.addr %s24, 128
          %s1965 = scalar_lea.hbm %s10, %s1964
          %s1967 = sshll.u32 %s1957, 4
          %s1968 = int_to_ptr.vmem [resolvable:$true] %s1967
          %1970 = dma.vmem_to_hbm [thread:$0]  %s1968, 128, %s1965, %s1954
        $region64: #{gpt_decoder_forward.1} parent=59 // pred_fallthru
          _
      $region60: #{gpt_decoder_forward.1} parent=5 // pred_fallthru
        _
      %p1971 = scmp.le.s32.totalorder 2, %s19
      // Predicated region
      $region65: #{gpt_decoder_forward.1} parent=5 // pred_check
        %p1972 = pneg %p1971
      $region66: #{gpt_decoder_forward.1} parent=5 // pred_check_branch
        %1974 = sbr.rel (%p1972) target = $region68
      $region67: #{gpt_decoder_forward.1} parent=5 // pred_region
        %s1975 = ssub.s32 %s19, 2
        // Predicated region
        $region69: #{gpt_decoder_forward.1} parent=67 // pred_check
          %p1976 = pneg %p273
        $region70: #{gpt_decoder_forward.1} parent=67 // pred_check_branch
          %1978 = sbr.rel (%p1976) target = $region72
        $region71: #{gpt_decoder_forward.1} parent=67 // pred_region
          %s1979 = sand.u32 %s258, 1
          %s1980 = scalar_lea.sflag [#allocation3], %s1979
          %s1981 = sand.u32 %s258, 1
          %s1982 = smul.addr %s1981, 8
          %s1983 = scalar_lea.vmem [#allocation2], %s1982
          %1984 = dma.done %s1980, 128
        $region72: #{gpt_decoder_forward.1} parent=67 // pred_fallthru
          _
      $region68: #{gpt_decoder_forward.1} parent=5 // pred_fallthru
        _
    $region6: #{gpt_decoder_forward.1} parent=1 // loop_footer
      %s23 = sadd.s32 1, %s19
    $region7: #{gpt_decoder_forward.1} parent=1 // loop_footer_branch
      %18 = sbr.rel target = $region3
    $region8: #{gpt_decoder_forward.1} parent=1 // loop_exit
      _
    %1985 = vsyncpa [#allocation3], 1
    %s1986 = scalar_lea.sflag [#allocation3], 1
    %1987 = vsyncpa %s1986, 1

</llo_original>
